<compile_context>
chip_gen: v7x
topology: tpu7x:2x2x1
jax: 0.10.0
libtpu: 0.0.40
codegen_flags: <defaults>
</compile_context>

<pallas_src>
import functools
import math

import jax
import jax.numpy as jnp
import numpy as np
from jax.experimental import pallas as pl
from jax.experimental.pallas import tpu as pltpu

F32 = jnp.float32
BF16 = jnp.bfloat16


# ---------------------------------------------------------------------------
# Small helpers
# ---------------------------------------------------------------------------
def _round_up(x, m):
    return ((x + m - 1) // m) * m


def _pick_tile(dim, cap, quantum):
    """Largest multiple of `quantum` that divides `dim` and is <= cap."""
    cap = min(cap, dim)
    best = quantum
    d = quantum
    while d <= cap:
        if dim % d == 0:
            best = d
        d += quantum
    return best


def _lane_pack(c):
    """Pack narrow channel dims into full 128-lane rows (dense stores)."""
    if c < 128 and 128 % c == 0:
        return 128, 128 // c
    return c, 1


def _pack_params(scale, shift, alpha):
    return jnp.stack([scale, shift, alpha]).astype(F32)


def _ident_params(n):
    return _pack_params(jnp.ones((n,), F32), jnp.zeros((n,), F32), jnp.ones((n,), F32))


def _pad_hw(x, padv):
    """Pad H and W by 1 on each side with a per-channel value (exact BN1 fold)."""
    B, H, W, C = x.shape
    pv = padv.astype(x.dtype).reshape(1, 1, 1, C)
    row = jnp.broadcast_to(pv, (B, 1, W, C))
    x = jnp.concatenate([row, x, row], axis=1)
    col = jnp.broadcast_to(pv, (B, H + 2, 1, C))
    return jnp.concatenate([col, x, col], axis=2)


# ---------------------------------------------------------------------------
# Fused matmul kernels (im2col convs, 1x1 convs, FCs, interpolation)
# ---------------------------------------------------------------------------
def _mm_fused_kernel(a_ref, b_ref, p_ref, o_ref, acc_ref):
    """acc += a@b ; at last k: o = leaky(acc*scale + shift, alpha)."""
    @pl.when(pl.program_id(2) == 0)
    def _():
        acc_ref[...] = jnp.zeros_like(acc_ref)

    acc_ref[...] += jnp.dot(a_ref[...], b_ref[...],
                            preferred_element_type=jnp.float32)

    @pl.when(pl.program_id(2) == pl.num_programs(2) - 1)
    def _():
        t = acc_ref[...] * p_ref[0:1, :] + p_ref[1:2, :]
        o_ref[...] = jnp.where(t >= 0, t, p_ref[2:3, :] * t).astype(o_ref.dtype)


def _mm_fused_1k_kernel(a_ref, b_ref, p_ref, o_ref):
    """Single-K-step variant: no accumulator scratch, no predicated branches."""
    t = jnp.dot(a_ref[...], b_ref[...], preferred_element_type=jnp.float32)
    t = t * p_ref[0:1, :] + p_ref[1:2, :]
    o_ref[...] = jnp.where(t >= 0, t, p_ref[2:3, :] * t).astype(o_ref.dtype)


@functools.partial(jax.jit, static_argnames=('out_dtype',))
def pallas_matmul_fused(a, b, params, *, out_dtype=F32):
    """y = leaky((a @ b) * scale + shift, alpha); params = (3, N) [scale;shift;alpha]."""
    M, K = a.shape
    K2, N = b.shape
    assert K2 == K and params.shape == (3, N)
    Mp = _round_up(M, 8)
    a_p = a.astype(BF16)
    if Mp != M:
        a_p = jnp.pad(a_p, ((0, Mp - M), (0, 0)))
    b_p = b.astype(BF16)
    p_p = params.astype(F32)

    tk = _pick_tile(K, 512, 128) if K % 128 == 0 else K      # full-K block if ragged
    tn = _pick_tile(N, 512, 128) if N % 128 == 0 else N      # full-N block if ragged
    tm_cap = 1024 if tn <= 128 else 512
    tm = _pick_tile(Mp, tm_cap, 8)
    nk = K // tk

    if nk == 1:
        out = pl.pallas_call(
            _mm_fused_1k_kernel,
            out_shape=jax.ShapeDtypeStruct((Mp, N), out_dtype),
            grid=(Mp // tm, N // tn),
            in_specs=[pl.BlockSpec((tm, K), lambda i, j: (i, 0)),
                      pl.BlockSpec((K, tn), lambda i, j: (0, j)),
                      pl.BlockSpec((3, tn), lambda i, j: (0, j))],
            out_specs=pl.BlockSpec((tm, tn), lambda i, j: (i, j)),
            compiler_params=pltpu.CompilerParams(
                dimension_semantics=("parallel", "parallel")),
        )(a_p, b_p, p_p)
    else:
        out = pl.pallas_call(
            _mm_fused_kernel,
            out_shape=jax.ShapeDtypeStruct((Mp, N), out_dtype),
            grid_spec=pltpu.PrefetchScalarGridSpec(
                num_scalar_prefetch=0,
                grid=(Mp // tm, N // tn, nk),
                in_specs=[pl.BlockSpec((tm, tk), lambda i, j, k: (i, k)),
                          pl.BlockSpec((tk, tn), lambda i, j, k: (k, j)),
                          pl.BlockSpec((3, tn), lambda i, j, k: (0, j))],
                out_specs=pl.BlockSpec((tm, tn), lambda i, j, k: (i, j)),
                scratch_shapes=[pltpu.VMEM((tm, tn), jnp.float32)]),
            compiler_params=pltpu.CompilerParams(
                dimension_semantics=("parallel", "parallel", "arbitrary")),
        )(a_p, b_p, p_p)
    return out if Mp == M else out[:M]


# ---------------------------------------------------------------------------
# Direct stride-1 3x3 conv (no im2col in HBM)
# ---------------------------------------------------------------------------
def _make_direct_conv_kernel(th, wo):
    def kernel(x_ref, w_ref, p_ref, o_ref, acc_ref):
        # x_ref: (Hp, Wp, Cin) padded activation, resident in VMEM.
        # w_ref: (9, Cin, tn) bf16;  p_ref: (3, tn) f32;  o_ref: (th*wo, tn).
        row0 = pl.program_id(1) * th
        t = 0
        for dy in range(3):
            for dx in range(3):
                xs = x_ref[pl.ds(row0 + dy, th), dx:dx + wo, :]
                a = xs.reshape(th * wo, xs.shape[-1])
                c = jnp.dot(a, w_ref[t], preferred_element_type=jnp.float32)
                if t == 0:
                    acc_ref[...] = c
                else:
                    acc_ref[...] += c
                t += 1
        y = acc_ref[...] * p_ref[0:1, :] + p_ref[1:2, :]
        o_ref[...] = jnp.where(y >= 0, y, p_ref[2:3, :] * y).astype(o_ref.dtype)
    return kernel


@functools.partial(jax.jit, static_argnames=('out_dtype',))
def conv3x3_s1_direct(x, w9, params, padv, *, out_dtype=BF16):
    """3x3 stride-1 conv (padding 1) with fused per-cout epilogue.

    w9: (9, cin, cout) bf16, params: (3, cout) [scale; shift; alpha],
    padv: (cin,) per-channel pad value (-bn_shift/bn_scale for the BN1 fold, 0 else).
    """
    B, H, W, C = x.shape
    _, cin, cout = w9.shape
    assert cin == C
    xp = _pad_hw(x.astype(BF16), padv)
    Hp, Wp = H + 2, W + 2
    Ho, Wo = H, W

    tn = cout if cout <= 128 else 256
    if cout % tn:
        tn = cout
    m_cap = 2048 if cout <= 128 else 512
    th = _pick_tile(Ho, max(1, m_cap // Wo), 1)
    nI, nJ = Ho // th, cout // tn

    out_isz = jnp.dtype(out_dtype).itemsize
    need = (2 * Hp * Wp * C * 2 + 2 * 9 * cin * tn * 2
            + 2 * th * Wo * tn * out_isz + th * Wo * tn * 4)
    vmem_limit = int(min(50 * 2**20, max(24 * 2**20, need + 8 * 2**20)))

    out = pl.pallas_call(
        _make_direct_conv_kernel(th, Wo),
        out_shape=jax.ShapeDtypeStruct((B, Ho * Wo, cout), out_dtype),
        grid=(B, nI, nJ),
        in_specs=[pl.BlockSpec((None, Hp, Wp, C), lambda b, i, j: (b, 0, 0, 0)),
                  pl.BlockSpec((9, cin, tn), lambda b, i, j: (0, 0, j)),
                  pl.BlockSpec((3, tn), lambda b, i, j: (0, j))],
        out_specs=pl.BlockSpec((None, th * Wo, tn), lambda b, i, j: (b, i, j)),
        scratch_shapes=[pltpu.VMEM((th * Wo, tn), jnp.float32)],
        compiler_params=pltpu.CompilerParams(
            dimension_semantics=("parallel", "parallel", "parallel"),
            vmem_limit_bytes=vmem_limit),
    )(xp, w9, params.astype(F32))
    return out.reshape(B, Ho, Wo, cout)


# ---------------------------------------------------------------------------
# im2col conv (stride-2 3x3 and all 1x1 convs) -> fused matmul
# ---------------------------------------------------------------------------
@functools.partial(jax.jit, static_argnames=('kh', 'kw', 'stride', 'out_dtype'))
def conv2d_im2col(x, wm, params, *, kh, kw, stride, out_dtype=BF16):
    """NHWC conv (padding kh//2) via im2col + fused-epilogue matmul. wm: (kh*kw*cin, cout)."""
    B, H, W, C = x.shape
    pad = (kh - 1) // 2
    Ho = (H + 2 * pad - kh) // stride + 1
    Wo = (W + 2 * pad - kw) // stride + 1
    xb = x.astype(BF16)
    if kh == 1 and kw == 1:
        patches = xb[:, ::stride, ::stride, :].reshape(B * Ho * Wo, C)
    else:
        xp = jnp.pad(xb, ((0, 0), (pad, pad), (pad, pad), (0, 0)))
        cols = [xp[:, dy:dy + (Ho - 1) * stride + 1:stride,
                    dx:dx + (Wo - 1) * stride + 1:stride, :]
                for dy in range(kh) for dx in range(kw)]
        patches = jnp.concatenate(cols, axis=-1).reshape(B * Ho * Wo, kh * kw * C)
    out = pallas_matmul_fused(patches, wm, params, out_dtype=out_dtype)
    return out.reshape(B, Ho, Wo, -1)


# ---------------------------------------------------------------------------
# Elementwise / reduction kernels
# ---------------------------------------------------------------------------
def _add_kernel(a_ref, b_ref, o_ref):
    o_ref[...] = (a_ref[...].astype(jnp.float32)
                  + b_ref[...].astype(jnp.float32)).astype(o_ref.dtype)


@functools.partial(jax.jit, static_argnames=('out_dtype',))
def add_nhwc(a, b, *, out_dtype=BF16):
    B, H, W, C = a.shape
    Cl, _ = _lane_pack(C)
    M = (B * H * W * C) // Cl
    a2 = a.reshape(M, Cl)
    b2 = b.reshape(M, Cl)
    Mp = _round_up(M, 8)
    if Mp != M:
        a2 = jnp.pad(a2, ((0, Mp - M), (0, 0)))
        b2 = jnp.pad(b2, ((0, Mp - M), (0, 0)))
    cap = max(8, min(4096, (1 << 20) // (Cl * 2)))          # ~1 MB blocks
    tm = _pick_tile(Mp, cap, 8)
    out = pl.pallas_call(
        _add_kernel,
        out_shape=jax.ShapeDtypeStruct((Mp, Cl), out_dtype),
        grid=(Mp // tm,),
        in_specs=[pl.BlockSpec((tm, Cl), lambda i: (i, 0)),
                  pl.BlockSpec((tm, Cl), lambda i: (i, 0))],
        out_specs=pl.BlockSpec((tm, Cl), lambda i: (i, 0)),
        compiler_params=pltpu.CompilerParams(dimension_semantics=("parallel",)),
    )(a2, b2)
    return out[:M].reshape(B, H, W, C)


def _sum_rows_kernel(x_ref, o_ref):
    @pl.when(pl.program_id(1) == 0)
    def _():
        o_ref[...] = jnp.zeros_like(o_ref)
    o_ref[...] += jnp.sum(x_ref[...].astype(jnp.float32), axis=1, keepdims=True)


@jax.jit
def spatial_sum(x):
    """(B,H,W,C) -> (B,C) f32 spatial sum, split 2-way along HW (v7x 2-TC)."""
    B, H, W, C = x.shape
    HW = H * W
    G = 2 if HW % 16 == 0 else 1
    x3 = x.reshape(B * G, HW // G, C)
    t = _pick_tile(HW // G, 2048, 8)
    out = pl.pallas_call(
        _sum_rows_kernel,
        out_shape=jax.ShapeDtypeStruct((B * G, 1, C), F32),
        grid=(B * G, (HW // G) // t),
        in_specs=[pl.BlockSpec((1, t, C), lambda b, i: (b, i, 0))],
        out_specs=pl.BlockSpec((1, 1, C), lambda b, i: (b, 0, 0)),
        compiler_params=pltpu.CompilerParams(
            dimension_semantics=("parallel", "arbitrary")),
    )(x3)
    return out.reshape(B, G, C).sum(axis=1)


def _se_excite_kernel(p_ref, w1_ref, w2_ref, o_ref):
    """gate = sigmoid(relu(p @ w1) @ w2) -- both weights resident in VMEM."""
    h = jnp.dot(p_ref[...], w1_ref[...], preferred_element_type=jnp.float32)
    h = jnp.maximum(h, 0.0).astype(jnp.bfloat16)
    s = jnp.dot(h, w2_ref[...], preferred_element_type=jnp.float32)
    o_ref[...] = jax.nn.sigmoid(s)


@jax.jit
def se_gate(pooled, w1p, w2p):
    """pooled: (B, C) f32 means; w1p: (C,128) bf16 (zero-padded), w2p: (128,C) bf16."""
    B, C = pooled.shape
    Bp = _round_up(B, 8)
    p = pooled.astype(BF16)
    if Bp != B:
        p = jnp.pad(p, ((0, Bp - B), (0, 0)))
    gate = pl.pallas_call(
        _se_excite_kernel,
        out_shape=jax.ShapeDtypeStruct((Bp, C), F32),
        grid=(1,),
        in_specs=[pl.BlockSpec((Bp, C), lambda i: (0, 0)),
                  pl.BlockSpec((C, 128), lambda i: (0, 0)),
                  pl.BlockSpec((128, C), lambda i: (0, 0))],
        out_specs=pl.BlockSpec((Bp, C), lambda i: (0, 0)),
    )(p, w1p, w2p)
    return gate[:B]


def _se_add_kernel(r_ref, g_ref, sc_ref, o_ref):
    o_ref[...] = (r_ref[...].astype(jnp.float32) * g_ref[...]
                  + sc_ref[...].astype(jnp.float32)).astype(o_ref.dtype)


@functools.partial(jax.jit, static_argnames=('out_dtype',))
def se_scale_add(r, gate, sc, *, out_dtype=BF16):
    """out = r * gate[:,None,None,:] + sc   (SE gating fused with the residual add)."""
    B, H, W, C = r.shape
    Cl, rep = _lane_pack(C)
    rows = (H * W * C) // Cl
    r3 = r.reshape(B, rows, Cl)
    sc3 = sc.reshape(B, rows, Cl)
    g3 = jnp.tile(gate.astype(F32).reshape(B, 1, C), (1, 1, rep))
    cap = max(8, min(4096, (1 << 20) // (Cl * 2)))          # ~1 MB blocks
    t = _pick_tile(rows, cap, 8)
    out = pl.pallas_call(
        _se_add_kernel,
        out_shape=jax.ShapeDtypeStruct((B, rows, Cl), out_dtype),
        grid=(B, rows // t),
        in_specs=[pl.BlockSpec((1, t, Cl), lambda b, i: (b, i, 0)),
                  pl.BlockSpec((1, 1, Cl), lambda b, i: (b, 0, 0)),
                  pl.BlockSpec((1, t, Cl), lambda b, i: (b, i, 0))],
        out_specs=pl.BlockSpec((1, t, Cl), lambda b, i: (b, i, 0)),
        compiler_params=pltpu.CompilerParams(
            dimension_semantics=("parallel", "parallel")),
    )(r3, g3, sc3)
    return out.reshape(B, H, W, C)


# ---------------------------------------------------------------------------
# Bilinear upsample (align_corners=True) + add
# ---------------------------------------------------------------------------
def _interp_matrix(n_in, n_out):
    pos = np.arange(n_out, dtype=np.float64) * (n_in - 1) / max(n_out - 1, 1)
    i0 = np.floor(pos).astype(np.int64)
    i1 = np.minimum(i0 + 1, n_in - 1)
    frac = (pos - i0).astype(np.float32)
    m = np.zeros((n_out, n_in), np.float32)
    m[np.arange(n_out), i0] += 1.0 - frac
    m[np.arange(n_out), i1] += frac
    return jnp.asarray(m)


@jax.jit
def upsample_add(x, y):
    """bilinear (align_corners=True) resize of x to y's spatial dims, plus y."""
    B, H, W, C = x.shape
    _, Ho, Wo, _ = y.shape
    Ah = _interp_matrix(H, Ho)
    Aw = _interp_matrix(W, Wo)
    pw = _ident_params(W * C)
    ph = _ident_params(Ho * C)
    outs = []
    for bidx in range(B):
        t1 = pallas_matmul_fused(Ah, x[bidx].reshape(H, W * C), pw, out_dtype=BF16)
        t1 = t1.reshape(Ho, W, C).transpose(1, 0, 2).reshape(W, Ho * C)
        t2 = pallas_matmul_fused(Aw, t1, ph, out_dtype=BF16)
        outs.append(t2.reshape(Wo, Ho, C).transpose(1, 0, 2))
    up = jnp.stack(outs, axis=0)
    return add_nhwc(up, y, out_dtype=BF16)


# ---------------------------------------------------------------------------
# Module pieces
# ---------------------------------------------------------------------------
def bottleneck_ir_se(x, p):
    stride = p['stride']
    if 'shortcut_wm' in p:                       # Conv1x1(stride) + BN shortcut
        sc = conv2d_im2col(x, p['shortcut_wm'], p['shortcut_params'],
                           kh=1, kw=1, stride=stride, out_dtype=BF16)
    else:                                        # MaxPool2d(1, stride)
        sc = x[:, ::stride, ::stride, :] if stride > 1 else x
    # BN1 is folded exactly into conv1 (pre-scaled weights + per-channel pad value).
    r = conv3x3_s1_direct(x, p['conv1_w9'], p['conv1_params'], p['conv1_padv'],
                          out_dtype=BF16)                     # conv1 + PReLU
    if stride == 1:
        r = conv3x3_s1_direct(r, p['conv2_w9'], p['conv2_params'], p['conv2_padv'],
                              out_dtype=BF16)                 # conv2 + BN2
    else:
        r = conv2d_im2col(r, p['conv2_wm'], p['conv2_params'],
                          kh=3, kw=3, stride=stride, out_dtype=BF16)
    B, H, W, C = r.shape
    pooled = spatial_sum(r) * (1.0 / float(H * W))            # SE avg-pool
    g = se_gate(pooled, p['se_w1p'], p['se_w2p'])             # fc1+ReLU+fc2+sigmoid
    return se_scale_add(r, g, sc, out_dtype=BF16)             # gating + residual add


def gradual_style_block(x, p):
    for cv in p['convs']:
        x = conv2d_im2col(x, cv['wm'], cv['params'],
                          kh=3, kw=3, stride=2, out_dtype=BF16)   # conv + bias + LeakyReLU
    B = x.shape[0]
    x2 = x.reshape(B, 512)                                        # spatial is 1x1
    return pallas_matmul_fused(x2, p['lin_w'], p['lin_params'], out_dtype=F32)


# ---------------------------------------------------------------------------
# Deterministic parameter construction (synthetic weights, pre-folded / bf16)
# ---------------------------------------------------------------------------
class KeyGen:
    def __init__(self, seed=0):
        self._key = jax.random.PRNGKey(seed)

    def __call__(self):
        self._key, k = jax.random.split(self._key)
        return k


def _conv_w(kg, kh, kw, cin, cout):
    std = math.sqrt(2.0 / (kh * kw * cin))
    return std * jax.random.normal(kg(), (kh, kw, cin, cout), F32)


def _bn(kg, c):
    gamma = 1.0 + 0.1 * jax.random.normal(kg(), (c,), F32)
    beta = 0.1 * jax.random.normal(kg(), (c,), F32)
    mean = 0.1 * jax.random.normal(kg(), (c,), F32)
    var = 1.0 + 0.1 * jax.random.uniform(kg(), (c,), F32)
    scale = gamma / jnp.sqrt(var + 1e-5)
    shift = beta - mean * scale
    return scale, shift


def _get_blocks_50():
    def get_block(in_c, depth, n, stride=2):
        return [(in_c, depth, stride)] + [(depth, depth, 1)] * (n - 1)
    return (get_block(64, 64, 3) + get_block(64, 128, 4)
            + get_block(128, 256, 14) + get_block(256, 512, 3))


def make_e4e_params(n_styles, seed=0):
    kg = KeyGen(seed)
    p = {}
    ones = lambda c: jnp.ones((c,), F32)
    zeros = lambda c: jnp.zeros((c,), F32)

    # input_layer: Conv2d(3,64,3,1,1,bias=False) + BN(64) + PReLU(64)
    w_in = _conv_w(kg, 3, 3, 3, 64)
    s_in, b_in = _bn(kg, 64)
    p['input_wm'] = w_in.reshape(27, 64).astype(BF16)
    p['input_params'] = _pack_params(s_in, b_in, jnp.full((64,), 0.25, F32))

    body = []
    for in_c, depth, stride in _get_blocks_50():
        u = {'stride': stride}
        if in_c != depth:
            w_sc = _conv_w(kg, 1, 1, in_c, depth)
            s_sc, b_sc = _bn(kg, depth)
            u['shortcut_wm'] = w_sc.reshape(in_c, depth).astype(BF16)
            u['shortcut_params'] = _pack_params(s_sc, b_sc, ones(depth))
        s1, b1 = _bn(kg, in_c)
        w1 = _conv_w(kg, 3, 3, in_c, depth)
        prelu = jnp.full((depth,), 0.25, F32)
        w2 = _conv_w(kg, 3, 3, depth, depth)
        s2, b2 = _bn(kg, depth)
        # Exact inference-BN1 fold into conv1 (incl. the 1-pixel zero-padded border).
        w1f = (w1 * s1.reshape(1, 1, in_c, 1)).reshape(9, in_c, depth)
        bias1 = jnp.einsum('hwio,i->o', w1, b1)
        u['conv1_w9'] = w1f.astype(BF16)
        u['conv1_params'] = _pack_params(ones(depth), bias1, prelu)
        u['conv1_padv'] = (-b1 / s1).astype(BF16)
        u['conv2_params'] = _pack_params(s2, b2, ones(depth))
        if stride == 1:
            u['conv2_w9'] = w2.reshape(9, depth, depth).astype(BF16)
            u['conv2_padv'] = jnp.zeros((depth,), BF16)
        else:
            u['conv2_wm'] = w2.reshape(9 * depth, depth).astype(BF16)
        # SE weights (1x1 convs, no bias), padded to 128 reduced channels.
        cr = depth // 16
        w_se1 = _conv_w(kg, 1, 1, depth, cr).reshape(depth, cr)
        w_se2 = _conv_w(kg, 1, 1, cr, depth).reshape(cr, depth)
        u['se_w1p'] = jnp.pad(w_se1, ((0, 0), (0, 128 - cr))).astype(BF16)
        u['se_w2p'] = jnp.pad(w_se2, ((0, 128 - cr), (0, 0))).astype(BF16)
        body.append(u)
    p['body'] = body

    styles = []
    for i in range(n_styles):
        res = 16 if i < 3 else (32 if i < 7 else 64)
        num_pools = int(math.log2(res))
        convs = []
        for _ in range(num_pools):
            w = _conv_w(kg, 3, 3, 512, 512)
            bcv = 0.01 * jax.random.normal(kg(), (512,), F32)
            convs.append({'wm': w.reshape(9 * 512, 512).astype(BF16),
                          'params': _pack_params(ones(512), bcv,
                                                 jnp.full((512,), 0.01, F32))})
        # FullyConnectedLayer(512,512): weight_gain = 1/sqrt(512) folded, bias_init=0
        lin_w = (jax.random.normal(kg(), (512, 512), F32) / math.sqrt(512.0)).astype(BF16)
        styles.append({'convs': convs, 'lin_w': lin_w,
                       'lin_params': _pack_params(ones(512), zeros(512), ones(512))})
    p['styles'] = styles

    for name, cin in (('latlayer1', 256), ('latlayer2', 128)):
        w = _conv_w(kg, 1, 1, cin, 512).reshape(cin, 512)
        bb = 0.01 * jax.random.normal(kg(), (512,), F32)
        p[name + '_wm'] = w.astype(BF16)
        p[name + '_params'] = _pack_params(ones(512), bb, ones(512))
    return p


# ---------------------------------------------------------------------------
# E4eEncoder forward
# ---------------------------------------------------------------------------
def e4e_encoder_forward(params, x_nchw, n_styles):
    assert x_nchw.shape[2] == 256 and x_nchw.shape[3] == 256, 'input_imsize must be 256'
    x = jnp.transpose(x_nchw.astype(F32), (0, 2, 3, 1))       # NCHW -> NHWC

    # input layer: Conv + BN + PReLU (fully fused epilogue)
    x = conv2d_im2col(x, params['input_wm'], params['input_params'],
                      kh=3, kw=3, stride=1, out_dtype=BF16)

    c1 = c2 = c3 = None
    for i, u in enumerate(params['body']):
        x = bottleneck_ir_se(x, u)
        if i == 6:
            c1 = x            # 128ch @ 64x64
        elif i == 20:
            c2 = x            # 256ch @ 32x32
        elif i == 23:
            c3 = x            # 512ch @ 16x16

    w0 = gradual_style_block(c3, params['styles'][0])          # (B, 512) f32
    w = jnp.tile(w0[:, None, :], (1, n_styles, 1))

    coarse_ind, middle_ind = 3, 7
    stage = n_styles                                           # progressive_stage
    features = c3
    p2 = None
    for i in range(1, min(stage + 1, n_styles)):
        if i == coarse_ind:
            lat = conv2d_im2col(c2, params['latlayer1_wm'], params['latlayer1_params'],
                                kh=1, kw=1, stride=1, out_dtype=BF16)
            p2 = upsample_add(c3, lat)
            features = p2
        elif i == middle_ind:
            lat = conv2d_im2col(c1, params['latlayer2_wm'], params['latlayer2_params'],
                                kh=1, kw=1, stride=1, out_dtype=BF16)
            p1 = upsample_add(p2, lat)
            features = p1
        delta_i = gradual_style_block(features, params['styles'][i])
        w = w.at[:, i, :].add(delta_i)
    return w                                                   # (B, n_styles, 512) f32


if __name__ == "__main__":
    N_STYLES = 8      # >= 8 so the coarse (<3), middle (<7) and fine (>=7) paths all run
    IMSIZE = 256      # E4eEncoder asserts input_imsize == 256
    BATCH = 1

    params = make_e4e_params(N_STYLES, seed=0)
    x = 0.5 * jax.random.normal(jax.random.PRNGKey(0), (BATCH, 3, IMSIZE, IMSIZE), F32)

    w = e4e_encoder_forward(params, x, N_STYLES)
    w = jax.block_until_ready(w)

    assert w.shape == (BATCH, N_STYLES, 512), w.shape
    assert bool(jnp.all(jnp.isfinite(w)))
    print("KERNEL_OK")
</pallas_src>

<mosaic_0001>
module attributes {stable_mosaic.version = 11 : i64} {
  func.func @_mm_fused_1k_kernel(%arg0: i32, %arg1: i32, %arg2: memref<1024x27xbf16, #tpu.memory_space<vmem>>, %arg3: memref<27x64xbf16, #tpu.memory_space<vmem>>, %arg4: memref<3x64xf32, #tpu.memory_space<vmem>>, %arg5: memref<1024x64xbf16, #tpu.memory_space<vmem>>) attributes {dimension_semantics = [#tpu.dimension_semantics<parallel>, #tpu.dimension_semantics<parallel>], iteration_bounds = array<i64: 64, 1>, scalar_prefetch = 0 : i64, scratch_operands = 0 : i64, tpu.core_type = #tpu.core_type<tc>, window_params = [{transform_indices = @transform_0, window_bounds = array<i64: 1024, 27>}, {transform_indices = @transform_1, window_bounds = array<i64: 27, 64>}, {transform_indices = @transform_2, window_bounds = array<i64: 3, 64>}, {transform_indices = @transform_3, window_bounds = array<i64: 1024, 64>}]} {
    %c0 = arith.constant 0 : index
    %c0_0 = arith.constant 0 : index
    %0 = vector.load %arg2[%c0, %c0_0] : memref<1024x27xbf16, #tpu.memory_space<vmem>>, vector<1024x27xbf16>
    %c0_1 = arith.constant 0 : index
    %c0_2 = arith.constant 0 : index
    %1 = vector.load %arg3[%c0_1, %c0_2] : memref<27x64xbf16, #tpu.memory_space<vmem>>, vector<27x64xbf16>
    %cst = arith.constant dense<0.000000e+00> : vector<1024x64xf32>
    %2 = tpu.matmul %0, %1, %cst {dimension_numbers = #tpu.dot_dimension_numbers<[1], [0], [0], [1], [0, 0, 1, 1], [], []>} : vector<1024x27xbf16>, vector<27x64xbf16>, vector<1024x64xf32> -> vector<1024x64xf32>
    %c0_3 = arith.constant 0 : index
    %c0_4 = arith.constant 0 : index
    %3 = vector.load %arg4[%c0_3, %c0_4] : memref<3x64xf32, #tpu.memory_space<vmem>>, vector<1x64xf32>
    %4 = vector.broadcast %3 : vector<1x64xf32> to vector<1024x64xf32>
    %5 = arith.mulf %2, %4 : vector<1024x64xf32>
    %c1 = arith.constant 1 : index
    %c0_5 = arith.constant 0 : index
    %6 = vector.load %arg4[%c1, %c0_5] : memref<3x64xf32, #tpu.memory_space<vmem>>, vector<1x64xf32>
    %7 = vector.broadcast %6 : vector<1x64xf32> to vector<1024x64xf32>
    %8 = arith.addf %5, %7 : vector<1024x64xf32>
    %cst_6 = arith.constant 0.000000e+00 : f32
    %9 = vector.broadcast %cst_6 : f32 to vector<1024x64xf32>
    %10 = arith.cmpf oge, %8, %9 : vector<1024x64xf32>
    %c2 = arith.constant 2 : index
    %c0_7 = arith.constant 0 : index
    %11 = vector.load %arg4[%c2, %c0_7] : memref<3x64xf32, #tpu.memory_space<vmem>>, vector<1x64xf32>
    %12 = vector.broadcast %11 : vector<1x64xf32> to vector<1024x64xf32>
    %13 = arith.mulf %12, %8 : vector<1024x64xf32>
    %14 = arith.select %10, %8, %13 : vector<1024x64xi1>, vector<1024x64xf32>
    %15 = arith.truncf %14 : vector<1024x64xf32> to vector<1024x64xbf16>
    %c0_8 = arith.constant 0 : index
    %c0_9 = arith.constant 0 : index
    %16 = vector.load %arg5[%c0_8, %c0_9] : memref<1024x64xbf16, #tpu.memory_space<vmem>>, vector<1024x64xbf16>
    tpu.vector_store %arg5[%c0_8, %c0_9], %15 {strides = array<i32>} : memref<1024x64xbf16, #tpu.memory_space<vmem>>, vector<1024x64xbf16>,
    return
  }
  func.func @transform_0(%arg0: i32, %arg1: i32) -> (i32, i32) {
    %c0_i32 = arith.constant 0 : i32
    %c0_i32_0 = arith.constant 0 : i32
    return %arg0, %c0_i32 : i32, i32
  }
  func.func @transform_1(%arg0: i32, %arg1: i32) -> (i32, i32) {
    %c0_i32 = arith.constant 0 : i32
    %c0_i32_0 = arith.constant 0 : i32
    return %c0_i32, %arg1 : i32, i32
  }
  func.func @transform_2(%arg0: i32, %arg1: i32) -> (i32, i32) {
    %c0_i32 = arith.constant 0 : i32
    %c0_i32_0 = arith.constant 0 : i32
    return %c0_i32, %arg1 : i32, i32
  }
  func.func @transform_3(%arg0: i32, %arg1: i32) -> (i32, i32) {
    %c0_i32 = arith.constant 0 : i32
    return %arg0, %arg1 : i32, i32
  }
}

</mosaic_0001>

<llo_original>
// kernel: pallas_matmul_fused.1
$region0: #{pallas_matmul_fused.1}
  #allocation0 [shape = 'u32[]', space=smem, size = 0x4, offset = 0x4, fixed_abs, tag = 'smem constant byte address 0x4 - core index']
  #allocation1 [shape = 'u32[144,128]{1,0:T(1,128)}', space=vmem, size = 0x12000, scoped, tag = 'internal scratch']
  %s0 = inlined_call_operand.vmem [shape: bf16[65536,27], index: 0, kind: input, shape index: {}]
  %s1 = inlined_call_operand.hbm [shape: bf16[27,64], index: 1, kind: input, shape index: {}]
  %s2 = inlined_call_operand.hbm [shape: f32[3,64], index: 2, kind: input, shape index: {}]
  %s3 = inlined_call_operand.vmem [shape: bf16[65536,64], index: 3, kind: output, shape index: {}]
  %s4 = sld [smem:[#allocation0]]
  $region53: #{pallas_matmul_fused.1} parent=0
    _
  %s6 = ssub.s32 1, %s4
  %s7 = scalar_select 0, %s6, %s4
  $region1: #{pallas_matmul_fused.1} parent=0
    #allocation2 [shape = 'u8[8192]{0}', space=vmem, size = 0x2000, scoped, tag = 'input window, operand 1, single buffered']
    #allocation3 [shape = 's32[2]{0}', space=sflag, size = 0x8, scoped, tag = 'scoped memory for pallas_matmul_fused.1']
    #allocation4 [shape = 'u8[2048]{0}', space=vmem, size = 0x800, scoped, tag = 'input window, operand 2, single buffered']
    #allocation5 [shape = 's32[1]{0}', space=sflag, size = 0x4, scoped, tag = 'scoped memory for pallas_matmul_fused.1']
    %8 = vsyncpa [#allocation3], 0
    %9 = vsyncpa [#allocation5], 0
    loop: start=0, step=1, limit=66
    $region2: #{pallas_matmul_fused.1} parent=1 // loop_pre_header
      _
    $region3: #{pallas_matmul_fused.1} parent=1 // loop_header
      %s11 = sphi 0, %s15
      %p12 = scmp.ge.s32.totalorder %s11, 66
      %s18 = sphi 0, %s30
      %s19 = sphi 0, %s26
      %s20 = sphi 0, %s18
      %s21 = sphi 0, %s19
      %s22 = sphi 0, %s20
      %s23 = sphi 0, %s21
      %s33 = sphi 0, %s35
      %s36 = sphi 0, %s33
      %s37 = sphi 0, %s36
      %s53 = sphi 0, %s37
      %s59 = sphi 0, %s61
      %s62 = sphi 0, %s59
      %s63 = sphi 0, %s62
      %s79 = sphi 0, %s63
      %s85 = sphi 0, %s87
      %s88 = sphi 0, %s85
      %s89 = sphi 0, %s88
      %s105 = sphi 0, %s89
      %s113 = sphi 0, %s115
      %s116 = sphi 0, %s113
      %s117 = sphi 0, %s116
      %s133 = sphi 0, %s117
    $region4: #{pallas_matmul_fused.1} parent=1 // loop_header_branch
      %14 = sbr.rel (%p12) target = $region8
    $region5: #{pallas_matmul_fused.1} parent=1 // loop_body
      %s16 = ssub.s32 %s11, 1
      %s17 = ssub.s32 %s11, 2
      %s24 = sadd.s32 1, %s19
      %p25 = scmp.ge.s32.totalorder %s24, 1
      %s26 = scalar_select %p25, 0, %s24
      %s27 = sadd.s32 1, %s18
      %s28 = scalar_select %p25, %s27, %s18
      %p29 = scmp.ge.s32.totalorder %s28, 64
      %s30 = scalar_select %p29, 0, %s28
      %s31 = ssub.s32 %s18, %s30
      %p32 = scmp.eq.s32.totalorder %s31, 0
      %s34 = sadd.s32 %s33, 1
      %s35 = scalar_select %p32, %s33, %s34
      %p38 = pneg %p32
      %p39 = scmp.eq.s32.totalorder %s11, 63
      %p40 = por %p38, %p39
      %p41 = scmp.ne.s32.totalorder %s33, %s36
      %p42 = scmp.eq.s32.totalorder %s11, 0
      %p43 = por %p41, %p42
      %p44 = scmp.ne.s32.totalorder %s33, %s36
      %p45 = scmp.eq.s32.totalorder %s16, 63
      %p46 = por %p44, %p45
      %p47 = scmp.ne.s32.totalorder %s36, %s37
      %p48 = scmp.eq.s32.totalorder %s16, 0
      %p49 = por %p47, %p48
      %p50 = scmp.ne.s32.totalorder %s36, %s37
      %p51 = scmp.eq.s32.totalorder %s17, 63
      %p52 = por %p50, %p51
      %p54 = scmp.ne.s32.totalorder %s37, %s53
      %p55 = scmp.eq.s32.totalorder %s17, 0
      %p56 = por %p54, %p55
      %s57 = ssub.s32 %s19, %s26
      %p58 = scmp.eq.s32.totalorder %s57, 0
      %s60 = sadd.s32 %s59, 1
      %s61 = scalar_select %p58, %s59, %s60
      %p64 = pneg %p58
      %p65 = scmp.eq.s32.totalorder %s11, 63
      %p66 = por %p64, %p65
      %p67 = scmp.ne.s32.totalorder %s59, %s62
      %p68 = scmp.eq.s32.totalorder %s11, 0
      %p69 = por %p67, %p68
      %p70 = scmp.ne.s32.totalorder %s59, %s62
      %p71 = scmp.eq.s32.totalorder %s16, 63
      %p72 = por %p70, %p71
      %p73 = scmp.ne.s32.totalorder %s62, %s63
      %p74 = scmp.eq.s32.totalorder %s16, 0
      %p75 = por %p73, %p74
      %p76 = scmp.ne.s32.totalorder %s62, %s63
      %p77 = scmp.eq.s32.totalorder %s17, 63
      %p78 = por %p76, %p77
      %p80 = scmp.ne.s32.totalorder %s63, %s79
      %p81 = scmp.eq.s32.totalorder %s17, 0
      %p82 = por %p80, %p81
      %s83 = ssub.s32 %s19, %s26
      %p84 = scmp.eq.s32.totalorder %s83, 0
      %s86 = sadd.s32 %s85, 1
      %s87 = scalar_select %p84, %s85, %s86
      %p90 = pneg %p84
      %p91 = scmp.eq.s32.totalorder %s11, 63
      %p92 = por %p90, %p91
      %p93 = scmp.ne.s32.totalorder %s85, %s88
      %p94 = scmp.eq.s32.totalorder %s11, 0
      %p95 = por %p93, %p94
      %p96 = scmp.ne.s32.totalorder %s85, %s88
      %p97 = scmp.eq.s32.totalorder %s16, 63
      %p98 = por %p96, %p97
      %p99 = scmp.ne.s32.totalorder %s88, %s89
      %p100 = scmp.eq.s32.totalorder %s16, 0
      %p101 = por %p99, %p100
      %p102 = scmp.ne.s32.totalorder %s88, %s89
      %p103 = scmp.eq.s32.totalorder %s17, 63
      %p104 = por %p102, %p103
      %p106 = scmp.ne.s32.totalorder %s89, %s105
      %p107 = scmp.eq.s32.totalorder %s17, 0
      %p108 = por %p106, %p107
      %s109 = ssub.s32 %s18, %s30
      %s110 = ssub.s32 %s19, %s26
      %s111 = sor.u32 %s109, %s110
      %p112 = scmp.eq.s32.totalorder %s111, 0
      %s114 = sadd.s32 %s113, 1
      %s115 = scalar_select %p112, %s113, %s114
      %p118 = pneg %p112
      %p119 = scmp.eq.s32.totalorder %s11, 63
      %p120 = por %p118, %p119
      %p121 = scmp.ne.s32.totalorder %s113, %s116
      %p122 = scmp.eq.s32.totalorder %s11, 0
      %p123 = por %p121, %p122
      %p124 = scmp.ne.s32.totalorder %s113, %s116
      %p125 = scmp.eq.s32.totalorder %s16, 63
      %p126 = por %p124, %p125
      %p127 = scmp.ne.s32.totalorder %s116, %s117
      %p128 = scmp.eq.s32.totalorder %s16, 0
      %p129 = por %p127, %p128
      %p130 = scmp.ne.s32.totalorder %s116, %s117
      %p131 = scmp.eq.s32.totalorder %s17, 63
      %p132 = por %p130, %p131
      %p134 = scmp.ne.s32.totalorder %s117, %s133
      %p135 = scmp.eq.s32.totalorder %s17, 0
      %p136 = por %p134, %p135
      %p137 = scmp.le.s32.totalorder 1, %s11
      %p138 = scmp.lt.s32.totalorder %s11, 65
      %p139 = pnand %p137, %p138
      %p140 = pneg %p139
      // Predicated region
      $region9: #{pallas_matmul_fused.1} parent=5 // pred_check
        _
      $region10: #{pallas_matmul_fused.1} parent=5 // pred_check_branch
        %142 = sbr.rel (%p139) target = $region12
      $region11: #{pallas_matmul_fused.1} parent=5 // pred_region
        %s143 = ssub.s32 %s11, 1
        // Predicated region
        $region13: #{pallas_matmul_fused.1} parent=11 // pred_check
          %p144 = pneg %p75
        $region14: #{pallas_matmul_fused.1} parent=11 // pred_check_branch
          %146 = sbr.rel (%p144) target = $region16
        $region15: #{pallas_matmul_fused.1} parent=11 // pred_region
          %s148 = ssub.s32 256, 256
          %149 = vsyncadd [#allocation3], %s148
          %s150 = smul.addr %s21, 64
          %s151 = scalar_lea.hbm %s1, %s150
          %s152 = sshll.u32 [#allocation2], 4
          %s153 = int_to_ptr.vmem [resolvable:$true] %s152
          %158 = dma.hbm_to_vmem [thread:$0]  %s151, 256, %s153, [#allocation3], 64, 64, 4
        $region16: #{pallas_matmul_fused.1} parent=11 // pred_fallthru
          _
        // Predicated region
        $region17: #{pallas_matmul_fused.1} parent=11 // pred_check
          %p159 = pneg %p101
        $region18: #{pallas_matmul_fused.1} parent=11 // pred_check_branch
          %161 = sbr.rel (%p159) target = $region20
        $region19: #{pallas_matmul_fused.1} parent=11 // pred_region
          %s163 = ssub.s32 64, 64
          %164 = vsyncadd [#allocation5], %s163
          %s165 = smul.addr %s21, 64
          %s166 = scalar_lea.hbm %s2, %s165
          %s168 = sshll.u32 [#allocation4], 4
          %s169 = int_to_ptr.vmem [resolvable:$true] %s168
          %171 = dma.hbm_to_vmem [thread:$0]  %s166, 64, %s169, [#allocation5]
        $region20: #{pallas_matmul_fused.1} parent=11 // pred_fallthru
          _
      $region12: #{pallas_matmul_fused.1} parent=5 // pred_fallthru
        _
      %p172 = scmp.lt.s32.totalorder %s11, 64
      // Predicated region
      $region21: #{pallas_matmul_fused.1} parent=5 // pred_check
        %p173 = pneg %p172
      $region22: #{pallas_matmul_fused.1} parent=5 // pred_check_branch
        %175 = sbr.rel (%p173) target = $region24
      $region23: #{pallas_matmul_fused.1} parent=5 // pred_region
        // Predicated region
        $region25: #{pallas_matmul_fused.1} parent=23 // pred_check
          %p176 = pneg %p43
        $region26: #{pallas_matmul_fused.1} parent=23 // pred_check_branch
          %178 = sbr.rel (%p176) target = $region28
        $region27: #{pallas_matmul_fused.1} parent=23 // pred_region
          %s179 = smul.u32 128, %s18
          %p180 = scmp.lt.s32.totalorder %s179, 8191
          %s181 = scalar_select %p180, %s179, 8191
          %s182 = smul.addr %s181, 4
          %s183 = scalar_lea.vmem %s0, %s182
          %s184 = smul.u32 128, %s18
        $region28: #{pallas_matmul_fused.1} parent=23 // pred_fallthru
          _
      $region24: #{pallas_matmul_fused.1} parent=5 // pred_fallthru
        _
      %p185 = scmp.le.s32.totalorder 1, %s11
      %p186 = scmp.lt.s32.totalorder %s11, 65
      %p187 = pnand %p185, %p186
      %p188 = pneg %p187
      // Predicated region
      $region29: #{pallas_matmul_fused.1} parent=5 // pred_check
        _
      $region30: #{pallas_matmul_fused.1} parent=5 // pred_check_branch
        %190 = sbr.rel (%p187) target = $region32
      $region31: #{pallas_matmul_fused.1} parent=5 // pred_region
        %s191 = ssub.s32 %s11, 1
        // Predicated region
        $region33: #{pallas_matmul_fused.1} parent=31 // pred_check
          %p192 = pneg %p75
        $region34: #{pallas_matmul_fused.1} parent=31 // pred_check_branch
          %194 = sbr.rel (%p192) target = $region36
        $region35: #{pallas_matmul_fused.1} parent=31 // pred_region
          %195 = dma.done [#allocation3], 256
        $region36: #{pallas_matmul_fused.1} parent=31 // pred_fallthru
          _
        // Predicated region
        $region37: #{pallas_matmul_fused.1} parent=31 // pred_check
          %p196 = pneg %p101
        $region38: #{pallas_matmul_fused.1} parent=31 // pred_check_branch
          %198 = sbr.rel (%p196) target = $region40
        $region39: #{pallas_matmul_fused.1} parent=31 // pred_region
          %199 = dma.done [#allocation5], 64
        $region40: #{pallas_matmul_fused.1} parent=31 // pred_fallthru
          _
        %s200 = smul.u32 128, %s20
        %p201 = scmp.lt.s32.totalorder %s200, 8191
        %s202 = scalar_select %p201, %s200, 8191
        %s203 = smul.addr %s202, 4
        %s204 = scalar_lea.vmem %s0, %s203
        %p205 = pneg %p49
        %p206 = pneg %p46
        %p207 = pneg %p75
        %p208 = pneg %p72
        %p209 = pneg %p101
        %p210 = pneg %p98
        %p211 = pneg %p129
        %p212 = pneg %p126
        %s213 = smul.u32 128, %s20
        %p214 = scmp.lt.s32.totalorder %s213, 8191
        %s215 = scalar_select %p214, %s213, 8191
        %p216 = scmp.lt.s32.totalorder %s21, 0
        %s217 = scalar_select %p216, %s21, 0
        %s218 = sadd.s32 %s217, %s215
        %s219 = smul.addr %s218, 4
        %s220 = scalar_lea.vmem %s3, %s219
        %s221 = smul.u32 128, %s20
        %p222 = scmp.lt.s32.totalorder %s221, 8191
        %s223 = scalar_select %p222, %s221, 8191
        %s224 = smul.addr %s223, 4
        %s225 = scalar_lea.vmem %s0, %s224
        %s226 = smul.u32 128, %s20
        %s227 = smul.u32 128, %s20
        %p228 = scmp.lt.s32.totalorder %s227, 8191
        %s229 = scalar_select %p228, %s227, 8191
        %p230 = scmp.lt.s32.totalorder %s21, 0
        %s231 = scalar_select %p230, %s21, 0
        %s232 = sadd.s32 %s231, %s229
        %s233 = smul.addr %s232, 4
        %s234 = scalar_lea.vmem %s3, %s233
        %s235 = smul.u32 128, %s20
        %v237 = vld [vmem:[%s225] sm:$0xf]
        %v238 = vld [vmem:[%s225 + $0x4] sm:$0xf]
        %v239 = vld [vmem:[%s225 + $0x8] sm:$0xf]
        %v240 = vld [vmem:[%s225 + $0xc] sm:$0xf]
        %v241 = vld [vmem:[%s225 + $0x10] sm:$0xf]
        %v242 = vld [vmem:[%s225 + $0x14] sm:$0xf]
        %v243 = vld [vmem:[%s225 + $0x18] sm:$0xf]
        %v244 = vld [vmem:[%s225 + $0x1c] sm:$0xf]
        %v245 = vld [vmem:[%s225 + $0x20] sm:$0xf]
        %v246 = vld [vmem:[%s225 + $0x24] sm:$0xf]
        %v247 = vld [vmem:[%s225 + $0x28] sm:$0xf]
        %v248 = vld [vmem:[%s225 + $0x2c] sm:$0xf]
        %v249 = vld [vmem:[%s225 + $0x30] sm:$0xf]
        %v250 = vld [vmem:[%s225 + $0x34] sm:$0xf]
        %v251 = vld [vmem:[%s225 + $0x38] sm:$0xf]
        %v252 = vld [vmem:[%s225 + $0x3c] sm:$0xf]
        %v253 = vld [vmem:[%s225 + $0x40] sm:$0xf]
        %v254 = vld [vmem:[%s225 + $0x44] sm:$0xf]
        %v255 = vld [vmem:[%s225 + $0x48] sm:$0xf]
        %v256 = vld [vmem:[%s225 + $0x4c] sm:$0xf]
        %v257 = vld [vmem:[%s225 + $0x50] sm:$0xf]
        %v258 = vld [vmem:[%s225 + $0x54] sm:$0xf]
        %v259 = vld [vmem:[%s225 + $0x58] sm:$0xf]
        %v260 = vld [vmem:[%s225 + $0x5c] sm:$0xf]
        %v261 = vld [vmem:[%s225 + $0x60] sm:$0xf]
        %v262 = vld [vmem:[%s225 + $0x64] sm:$0xf]
        %v263 = vld [vmem:[%s225 + $0x68] sm:$0xf]
        %v264 = vld [vmem:[%s225 + $0x6c] sm:$0xf]
        %v265 = vld [vmem:[%s225 + $0x70] sm:$0xf]
        %v266 = vld [vmem:[%s225 + $0x74] sm:$0xf]
        %v267 = vld [vmem:[%s225 + $0x78] sm:$0xf]
        %v268 = vld [vmem:[%s225 + $0x7c] sm:$0xf]
        %v269 = vld [vmem:[%s225 + $0x80] sm:$0xf]
        %v270 = vld [vmem:[%s225 + $0x84] sm:$0xf]
        %v271 = vld [vmem:[%s225 + $0x88] sm:$0xf]
        %v272 = vld [vmem:[%s225 + $0x8c] sm:$0xf]
        %v273 = vld [vmem:[%s225 + $0x90] sm:$0xf]
        %v274 = vld [vmem:[%s225 + $0x94] sm:$0xf]
        %v275 = vld [vmem:[%s225 + $0x98] sm:$0xf]
        %v276 = vld [vmem:[%s225 + $0x9c] sm:$0xf]
        %v277 = vld [vmem:[%s225 + $0xa0] sm:$0xf]
        %v278 = vld [vmem:[%s225 + $0xa4] sm:$0xf]
        %v279 = vld [vmem:[%s225 + $0xa8] sm:$0xf]
        %v280 = vld [vmem:[%s225 + $0xac] sm:$0xf]
        %v281 = vld [vmem:[%s225 + $0xb0] sm:$0xf]
        %v282 = vld [vmem:[%s225 + $0xb4] sm:$0xf]
        %v283 = vld [vmem:[%s225 + $0xb8] sm:$0xf]
        %v284 = vld [vmem:[%s225 + $0xbc] sm:$0xf]
        %v285 = vld [vmem:[%s225 + $0xc0] sm:$0xf]
        %v286 = vld [vmem:[%s225 + $0xc4] sm:$0xf]
        %v287 = vld [vmem:[%s225 + $0xc8] sm:$0xf]
        %v288 = vld [vmem:[%s225 + $0xcc] sm:$0xf]
        %v289 = vld [vmem:[%s225 + $0xd0] sm:$0xf]
        %v290 = vld [vmem:[%s225 + $0xd4] sm:$0xf]
        %v291 = vld [vmem:[%s225 + $0xd8] sm:$0xf]
        %v292 = vld [vmem:[%s225 + $0xdc] sm:$0xf]
        %v293 = vld [vmem:[%s225 + $0xe0] sm:$0xf]
        %v294 = vld [vmem:[%s225 + $0xe4] sm:$0xf]
        %v295 = vld [vmem:[%s225 + $0xe8] sm:$0xf]
        %v296 = vld [vmem:[%s225 + $0xec] sm:$0xf]
        %v297 = vld [vmem:[%s225 + $0xf0] sm:$0xf]
        %v298 = vld [vmem:[%s225 + $0xf4] sm:$0xf]
        %v299 = vld [vmem:[%s225 + $0xf8] sm:$0xf]
        %v300 = vld [vmem:[%s225 + $0xfc] sm:$0xf]
        %v301 = vld [vmem:[%s225 + $0x100] sm:$0xf]
        %v302 = vld [vmem:[%s225 + $0x104] sm:$0xf]
        %v303 = vld [vmem:[%s225 + $0x108] sm:$0xf]
        %v304 = vld [vmem:[%s225 + $0x10c] sm:$0xf]
        %v305 = vld [vmem:[%s225 + $0x110] sm:$0xf]
        %v306 = vld [vmem:[%s225 + $0x114] sm:$0xf]
        %v307 = vld [vmem:[%s225 + $0x118] sm:$0xf]
        %v308 = vld [vmem:[%s225 + $0x11c] sm:$0xf]
        %v309 = vld [vmem:[%s225 + $0x120] sm:$0xf]
        %v310 = vld [vmem:[%s225 + $0x124] sm:$0xf]
        %v311 = vld [vmem:[%s225 + $0x128] sm:$0xf]
        %v312 = vld [vmem:[%s225 + $0x12c] sm:$0xf]
        %v313 = vld [vmem:[%s225 + $0x130] sm:$0xf]
        %v314 = vld [vmem:[%s225 + $0x134] sm:$0xf]
        %v315 = vld [vmem:[%s225 + $0x138] sm:$0xf]
        %v316 = vld [vmem:[%s225 + $0x13c] sm:$0xf]
        %v317 = vld [vmem:[%s225 + $0x140] sm:$0xf]
        %v318 = vld [vmem:[%s225 + $0x144] sm:$0xf]
        %v319 = vld [vmem:[%s225 + $0x148] sm:$0xf]
        %v320 = vld [vmem:[%s225 + $0x14c] sm:$0xf]
        %v321 = vld [vmem:[%s225 + $0x150] sm:$0xf]
        %v322 = vld [vmem:[%s225 + $0x154] sm:$0xf]
        %v323 = vld [vmem:[%s225 + $0x158] sm:$0xf]
        %v324 = vld [vmem:[%s225 + $0x15c] sm:$0xf]
        %v325 = vld [vmem:[%s225 + $0x160] sm:$0xf]
        %v326 = vld [vmem:[%s225 + $0x164] sm:$0xf]
        %v327 = vld [vmem:[%s225 + $0x168] sm:$0xf]
        %v328 = vld [vmem:[%s225 + $0x16c] sm:$0xf]
        %v329 = vld [vmem:[%s225 + $0x170] sm:$0xf]
        %v330 = vld [vmem:[%s225 + $0x174] sm:$0xf]
        %v331 = vld [vmem:[%s225 + $0x178] sm:$0xf]
        %v332 = vld [vmem:[%s225 + $0x17c] sm:$0xf]
        %v333 = vld [vmem:[%s225 + $0x180] sm:$0xf]
        %v334 = vld [vmem:[%s225 + $0x184] sm:$0xf]
        %v335 = vld [vmem:[%s225 + $0x188] sm:$0xf]
        %v336 = vld [vmem:[%s225 + $0x18c] sm:$0xf]
        %v337 = vld [vmem:[%s225 + $0x190] sm:$0xf]
        %v338 = vld [vmem:[%s225 + $0x194] sm:$0xf]
        %v339 = vld [vmem:[%s225 + $0x198] sm:$0xf]
        %v340 = vld [vmem:[%s225 + $0x19c] sm:$0xf]
        %v341 = vld [vmem:[%s225 + $0x1a0] sm:$0xf]
        %v342 = vld [vmem:[%s225 + $0x1a4] sm:$0xf]
        %v343 = vld [vmem:[%s225 + $0x1a8] sm:$0xf]
        %v344 = vld [vmem:[%s225 + $0x1ac] sm:$0xf]
        %v345 = vld [vmem:[%s225 + $0x1b0] sm:$0xf]
        %v346 = vld [vmem:[%s225 + $0x1b4] sm:$0xf]
        %v347 = vld [vmem:[%s225 + $0x1b8] sm:$0xf]
        %v348 = vld [vmem:[%s225 + $0x1bc] sm:$0xf]
        %v349 = vld [vmem:[%s225 + $0x1c0] sm:$0xf]
        %v350 = vld [vmem:[%s225 + $0x1c4] sm:$0xf]
        %v351 = vld [vmem:[%s225 + $0x1c8] sm:$0xf]
        %v352 = vld [vmem:[%s225 + $0x1cc] sm:$0xf]
        %v353 = vld [vmem:[%s225 + $0x1d0] sm:$0xf]
        %v354 = vld [vmem:[%s225 + $0x1d4] sm:$0xf]
        %v355 = vld [vmem:[%s225 + $0x1d8] sm:$0xf]
        %v356 = vld [vmem:[%s225 + $0x1dc] sm:$0xf]
        %v357 = vld [vmem:[%s225 + $0x1e0] sm:$0xf]
        %v358 = vld [vmem:[%s225 + $0x1e4] sm:$0xf]
        %v359 = vld [vmem:[%s225 + $0x1e8] sm:$0xf]
        %v360 = vld [vmem:[%s225 + $0x1ec] sm:$0xf]
        %v361 = vld [vmem:[%s225 + $0x1f0] sm:$0xf]
        %v362 = vld [vmem:[%s225 + $0x1f4] sm:$0xf]
        %v363 = vld [vmem:[%s225 + $0x1f8] sm:$0xf]
        %v364 = vld [vmem:[%s225 + $0x1fc] sm:$0xf]
        %v365 = vld [vmem:[#allocation2] sm:$0xf]
        %v366 = vld [vmem:[#allocation2 + $0x4] sm:$0xf]
        %v367 = vld [vmem:[#allocation2 + $0x8] sm:$0xf]
        %v368 = vld [vmem:[#allocation2 + $0xc] sm:$0x3]
        %v497 = vunpack.c.l.b16 %v237
        %v498 = vunpack.c.l.b16 %v238
        %v499 = vunpack.c.l.b16 %v239
        %v500 = vunpack.c.l.b16 %v240
        %v501 = vunpack.c.l.b16 %v241
        %v502 = vunpack.c.l.b16 %v242
        %v503 = vunpack.c.l.b16 %v243
        %v504 = vunpack.c.l.b16 %v244
        %v505 = vunpack.c.l.b16 %v245
        %v506 = vunpack.c.l.b16 %v246
        %v507 = vunpack.c.l.b16 %v247
        %v508 = vunpack.c.l.b16 %v248
        %v509 = vunpack.c.l.b16 %v249
        %v510 = vunpack.c.l.b16 %v250
        %v511 = vunpack.c.l.b16 %v251
        %v512 = vunpack.c.l.b16 %v252
        %v513 = vunpack.c.l.b16 %v253
        %v514 = vunpack.c.l.b16 %v254
        %v515 = vunpack.c.l.b16 %v255
        %v516 = vunpack.c.l.b16 %v256
        %v517 = vunpack.c.l.b16 %v257
        %v518 = vunpack.c.l.b16 %v258
        %v519 = vunpack.c.l.b16 %v259
        %v520 = vunpack.c.l.b16 %v260
        %v521 = vunpack.c.l.b16 %v261
        %v522 = vunpack.c.l.b16 %v262
        %v523 = vunpack.c.l.b16 %v263
        %v524 = vunpack.c.l.b16 %v264
        %v525 = vunpack.c.l.b16 %v265
        %v526 = vunpack.c.l.b16 %v266
        %v527 = vunpack.c.l.b16 %v267
        %v528 = vunpack.c.l.b16 %v268
        %v529 = vunpack.c.l.b16 %v269
        %v530 = vunpack.c.l.b16 %v270
        %v531 = vunpack.c.l.b16 %v271
        %v532 = vunpack.c.l.b16 %v272
        %v533 = vunpack.c.l.b16 %v273
        %v534 = vunpack.c.l.b16 %v274
        %v535 = vunpack.c.l.b16 %v275
        %v536 = vunpack.c.l.b16 %v276
        %v537 = vunpack.c.l.b16 %v277
        %v538 = vunpack.c.l.b16 %v278
        %v539 = vunpack.c.l.b16 %v279
        %v540 = vunpack.c.l.b16 %v280
        %v541 = vunpack.c.l.b16 %v281
        %v542 = vunpack.c.l.b16 %v282
        %v543 = vunpack.c.l.b16 %v283
        %v544 = vunpack.c.l.b16 %v284
        %v545 = vunpack.c.l.b16 %v285
        %v546 = vunpack.c.l.b16 %v286
        %v547 = vunpack.c.l.b16 %v287
        %v548 = vunpack.c.l.b16 %v288
        %v549 = vunpack.c.l.b16 %v289
        %v550 = vunpack.c.l.b16 %v290
        %v551 = vunpack.c.l.b16 %v291
        %v552 = vunpack.c.l.b16 %v292
        %v553 = vunpack.c.l.b16 %v293
        %v554 = vunpack.c.l.b16 %v294
        %v555 = vunpack.c.l.b16 %v295
        %v556 = vunpack.c.l.b16 %v296
        %v557 = vunpack.c.l.b16 %v297
        %v558 = vunpack.c.l.b16 %v298
        %v559 = vunpack.c.l.b16 %v299
        %v560 = vunpack.c.l.b16 %v300
        %v561 = vunpack.c.l.b16 %v301
        %v562 = vunpack.c.l.b16 %v302
        %v563 = vunpack.c.l.b16 %v303
        %v564 = vunpack.c.l.b16 %v304
        %v565 = vunpack.c.l.b16 %v305
        %v566 = vunpack.c.l.b16 %v306
        %v567 = vunpack.c.l.b16 %v307
        %v568 = vunpack.c.l.b16 %v308
        %v569 = vunpack.c.l.b16 %v309
        %v570 = vunpack.c.l.b16 %v310
        %v571 = vunpack.c.l.b16 %v311
        %v572 = vunpack.c.l.b16 %v312
        %v573 = vunpack.c.l.b16 %v313
        %v574 = vunpack.c.l.b16 %v314
        %v575 = vunpack.c.l.b16 %v315
        %v576 = vunpack.c.l.b16 %v316
        %v577 = vunpack.c.l.b16 %v317
        %v578 = vunpack.c.l.b16 %v318
        %v579 = vunpack.c.l.b16 %v319
        %v580 = vunpack.c.l.b16 %v320
        %v581 = vunpack.c.l.b16 %v321
        %v582 = vunpack.c.l.b16 %v322
        %v583 = vunpack.c.l.b16 %v323
        %v584 = vunpack.c.l.b16 %v324
        %v585 = vunpack.c.l.b16 %v325
        %v586 = vunpack.c.l.b16 %v326
        %v587 = vunpack.c.l.b16 %v327
        %v588 = vunpack.c.l.b16 %v328
        %v589 = vunpack.c.l.b16 %v329
        %v590 = vunpack.c.l.b16 %v330
        %v591 = vunpack.c.l.b16 %v331
        %v592 = vunpack.c.l.b16 %v332
        %v593 = vunpack.c.l.b16 %v333
        %v594 = vunpack.c.l.b16 %v334
        %v595 = vunpack.c.l.b16 %v335
        %v596 = vunpack.c.l.b16 %v336
        %v597 = vunpack.c.l.b16 %v337
        %v598 = vunpack.c.l.b16 %v338
        %v599 = vunpack.c.l.b16 %v339
        %v600 = vunpack.c.l.b16 %v340
        %v601 = vunpack.c.l.b16 %v341
        %v602 = vunpack.c.l.b16 %v342
        %v603 = vunpack.c.l.b16 %v343
        %v604 = vunpack.c.l.b16 %v344
        %v605 = vunpack.c.l.b16 %v345
        %v606 = vunpack.c.l.b16 %v346
        %v607 = vunpack.c.l.b16 %v347
        %v608 = vunpack.c.l.b16 %v348
        %v609 = vunpack.c.l.b16 %v349
        %v610 = vunpack.c.l.b16 %v350
        %v611 = vunpack.c.l.b16 %v351
        %v612 = vunpack.c.l.b16 %v352
        %v613 = vunpack.c.l.b16 %v353
        %v614 = vunpack.c.l.b16 %v354
        %v615 = vunpack.c.l.b16 %v355
        %v616 = vunpack.c.l.b16 %v356
        %v617 = vunpack.c.l.b16 %v357
        %v618 = vunpack.c.l.b16 %v358
        %v619 = vunpack.c.l.b16 %v359
        %v620 = vunpack.c.l.b16 %v360
        %v621 = vunpack.c.l.b16 %v361
        %v622 = vunpack.c.l.b16 %v362
        %v623 = vunpack.c.l.b16 %v363
        %v624 = vunpack.c.l.b16 %v364
        %v625 = vpack.c.b16 %v498, %v497
        %v626 = vpack.c.b16 %v500, %v499
        %v627 = vpack.c.b16 %v502, %v501
        %v628 = vpack.c.b16 %v504, %v503
        %v629 = vpack.c.b16 %v506, %v505
        %v630 = vpack.c.b16 %v508, %v507
        %v631 = vpack.c.b16 %v510, %v509
        %v632 = vpack.c.b16 %v512, %v511
        %v633 = vpack.c.b16 %v514, %v513
        %v634 = vpack.c.b16 %v516, %v515
        %v635 = vpack.c.b16 %v518, %v517
        %v636 = vpack.c.b16 %v520, %v519
        %v637 = vpack.c.b16 %v522, %v521
        %v638 = vpack.c.b16 %v524, %v523
        %v639 = vpack.c.b16 %v526, %v525
        %v640 = vpack.c.b16 %v528, %v527
        %v641 = vpack.c.b16 %v530, %v529
        %v642 = vpack.c.b16 %v532, %v531
        %v643 = vpack.c.b16 %v534, %v533
        %v644 = vpack.c.b16 %v536, %v535
        %v645 = vpack.c.b16 %v538, %v537
        %v646 = vpack.c.b16 %v540, %v539
        %v647 = vpack.c.b16 %v542, %v541
        %v648 = vpack.c.b16 %v544, %v543
        %v649 = vpack.c.b16 %v546, %v545
        %v650 = vpack.c.b16 %v548, %v547
        %v651 = vpack.c.b16 %v550, %v549
        %v652 = vpack.c.b16 %v552, %v551
        %v653 = vpack.c.b16 %v554, %v553
        %v654 = vpack.c.b16 %v556, %v555
        %v655 = vpack.c.b16 %v558, %v557
        %v656 = vpack.c.b16 %v560, %v559
        %v657 = vpack.c.b16 %v562, %v561
        %v658 = vpack.c.b16 %v564, %v563
        %v659 = vpack.c.b16 %v566, %v565
        %v660 = vpack.c.b16 %v568, %v567
        %v661 = vpack.c.b16 %v570, %v569
        %v662 = vpack.c.b16 %v572, %v571
        %v663 = vpack.c.b16 %v574, %v573
        %v664 = vpack.c.b16 %v576, %v575
        %v665 = vpack.c.b16 %v578, %v577
        %v666 = vpack.c.b16 %v580, %v579
        %v667 = vpack.c.b16 %v582, %v581
        %v668 = vpack.c.b16 %v584, %v583
        %v669 = vpack.c.b16 %v586, %v585
        %v670 = vpack.c.b16 %v588, %v587
        %v671 = vpack.c.b16 %v590, %v589
        %v672 = vpack.c.b16 %v592, %v591
        %v673 = vpack.c.b16 %v594, %v593
        %v674 = vpack.c.b16 %v596, %v595
        %v675 = vpack.c.b16 %v598, %v597
        %v676 = vpack.c.b16 %v600, %v599
        %v677 = vpack.c.b16 %v602, %v601
        %v678 = vpack.c.b16 %v604, %v603
        %v679 = vpack.c.b16 %v606, %v605
        %v680 = vpack.c.b16 %v608, %v607
        %v681 = vpack.c.b16 %v610, %v609
        %v682 = vpack.c.b16 %v612, %v611
        %v683 = vpack.c.b16 %v614, %v613
        %v684 = vpack.c.b16 %v616, %v615
        %v685 = vpack.c.b16 %v618, %v617
        %v686 = vpack.c.b16 %v620, %v619
        %v687 = vpack.c.b16 %v622, %v621
        %v688 = vpack.c.b16 %v624, %v623
        %v693 = vunpack.c.l.b16 %v365
        %v694 = vunpack.c.l.b16 %v366
        %v695 = vunpack.c.l.b16 %v367
        %v696 = vunpack.c.l.b16 %v368
        %v697 = vpack.c.b16 %v694, %v693
        %v698 = vpack.c.b16 %v696, %v695
        %vm700 = vcmask 220160
        %v702 = vsel %vm700, %v625, 0
        %v705 = vsel %vm700, %v626, 0
        %v708 = vsel %vm700, %v627, 0
        %v711 = vsel %vm700, %v628, 0
        %v714 = vsel %vm700, %v629, 0
        %v717 = vsel %vm700, %v630, 0
        %v720 = vsel %vm700, %v631, 0
        %v723 = vsel %vm700, %v632, 0
        %v726 = vsel %vm700, %v633, 0
        %v729 = vsel %vm700, %v634, 0
        %v732 = vsel %vm700, %v635, 0
        %v735 = vsel %vm700, %v636, 0
        %v738 = vsel %vm700, %v637, 0
        %v741 = vsel %vm700, %v638, 0
        %v744 = vsel %vm700, %v639, 0
        %v747 = vsel %vm700, %v640, 0
        %v750 = vsel %vm700, %v641, 0
        %v753 = vsel %vm700, %v642, 0
        %v756 = vsel %vm700, %v643, 0
        %v759 = vsel %vm700, %v644, 0
        %v762 = vsel %vm700, %v645, 0
        %v765 = vsel %vm700, %v646, 0
        %v768 = vsel %vm700, %v647, 0
        %v771 = vsel %vm700, %v648, 0
        %v774 = vsel %vm700, %v649, 0
        %v777 = vsel %vm700, %v650, 0
        %v780 = vsel %vm700, %v651, 0
        %v783 = vsel %vm700, %v652, 0
        %v786 = vsel %vm700, %v653, 0
        %v789 = vsel %vm700, %v654, 0
        %v792 = vsel %vm700, %v655, 0
        %v795 = vsel %vm700, %v656, 0
        %v798 = vsel %vm700, %v657, 0
        %v801 = vsel %vm700, %v658, 0
        %v804 = vsel %vm700, %v659, 0
        %v807 = vsel %vm700, %v660, 0
        %v810 = vsel %vm700, %v661, 0
        %v813 = vsel %vm700, %v662, 0
        %v816 = vsel %vm700, %v663, 0
        %v819 = vsel %vm700, %v664, 0
        %v822 = vsel %vm700, %v665, 0
        %v825 = vsel %vm700, %v666, 0
        %v828 = vsel %vm700, %v667, 0
        %v831 = vsel %vm700, %v668, 0
        %v834 = vsel %vm700, %v669, 0
        %v837 = vsel %vm700, %v670, 0
        %v840 = vsel %vm700, %v671, 0
        %v843 = vsel %vm700, %v672, 0
        %v846 = vsel %vm700, %v673, 0
        %v849 = vsel %vm700, %v674, 0
        %v852 = vsel %vm700, %v675, 0
        %v855 = vsel %vm700, %v676, 0
        %v858 = vsel %vm700, %v677, 0
        %v861 = vsel %vm700, %v678, 0
        %v864 = vsel %vm700, %v679, 0
        %v867 = vsel %vm700, %v680, 0
        %v870 = vsel %vm700, %v681, 0
        %v873 = vsel %vm700, %v682, 0
        %v876 = vsel %vm700, %v683, 0
        %v879 = vsel %vm700, %v684, 0
        %v882 = vsel %vm700, %v685, 0
        %v885 = vsel %vm700, %v686, 0
        %v888 = vsel %vm700, %v687, 0
        %v891 = vsel %vm700, %v688, 0
        %vm893 = vcmask 1044480
        %vm894 = vcmask 1045504
        %v895 = vsel %vm893, 4294967295, 65535
        %v896 = vsel %vm894, %v895, 0
        %v898 = vand.u32 %v698, %v896
        %900 = vmatprep.subr.bf16.mxu0 0
        %901 = vmatpush1.bf16.msra.mxu0 %v697
        %902 = vmatprep.subr.bf16.mxu0 0
        %903 = vmatpush1.bf16.msra.mxu0 %v898
        %904 = vmatprep.subr.bf16.mxu0 0
        %905 = vmatpush1.bf16.msra.mxu0 0
        %906 = vmatprep.subr.bf16.mxu0 0
        %907 = vmatpush1.bf16.msra.mxu0 0
        %908 = vmatprep.subr.bf16.mxu0 0
        %909 = vmatpush1.bf16.msra.mxu0 0
        %910 = vmatprep.subr.bf16.mxu0 0
        %911 = vmatpush1.bf16.msra.mxu0 0
        %912 = vmatprep.subr.bf16.mxu0 0
        %913 = vmatpush1.bf16.msra.mxu0 0
        %914 = vmatprep.subr.bf16.mxu0 0
        %915 = vmatpush1.bf16.msra.mxu0 0
        %916 = vmatprep.subr.bf16.mxu0 0
        %917 = vmatpush1.bf16.msra.mxu0 0
        %918 = vmatprep.subr.bf16.mxu0 0
        %919 = vmatpush1.bf16.msra.mxu0 0
        %920 = vmatprep.subr.bf16.mxu0 0
        %921 = vmatpush1.bf16.msra.mxu0 0
        %922 = vmatprep.subr.bf16.mxu0 0
        %923 = vmatpush1.bf16.msra.mxu0 0
        %924 = vmatprep.subr.bf16.mxu0 0
        %925 = vmatpush1.bf16.msra.mxu0 0
        %926 = vmatprep.subr.bf16.mxu0 0
        %927 = vmatpush1.bf16.msra.mxu0 0
        %928 = vmatprep.subr.bf16.mxu0 0
        %929 = vmatpush1.bf16.msra.mxu0 0
        %930 = vmatprep.subr.bf16.mxu0 0
        %931 = vmatpush1.bf16.msra.mxu0 0
        %932 = vmatprep.mubr.bf16.mxu0 0
        %933 = vmatmul.mubr.bf16.gmra.mrb[0].mxu0 %v702
        %v934 = vpop.f32.mrb[0].mxu0
        %v935 = vadd.f32 0.0, %v934
        %v936 = vpop.f32.mrb[0].mxu0
        %v937 = vpop.f32.mrb[0].mxu0
        %v938 = vadd.f32 0.0, %v937
        %v939 = vpop.f32.mrb[0].mxu0
        %940 = vmatprep.mubr.bf16.mxu0 0
        %941 = vmatmul.mubr.bf16.gmra.mrb[0].mxu0 %v705
        %v942 = vpop.f32.mrb[0].mxu0
        %v943 = vadd.f32 0.0, %v942
        %v944 = vpop.f32.mrb[0].mxu0
        %v945 = vpop.f32.mrb[0].mxu0
        %v946 = vadd.f32 0.0, %v945
        %v947 = vpop.f32.mrb[0].mxu0
        %948 = vmatprep.mubr.bf16.mxu0 0
        %949 = vmatmul.mubr.bf16.gmra.mrb[0].mxu0 %v708
        %v950 = vpop.f32.mrb[0].mxu0
        %v951 = vadd.f32 0.0, %v950
        %v952 = vpop.f32.mrb[0].mxu0
        %v953 = vpop.f32.mrb[0].mxu0
        %v954 = vadd.f32 0.0, %v953
        %v955 = vpop.f32.mrb[0].mxu0
        %956 = vmatprep.mubr.bf16.mxu0 0
        %957 = vmatmul.mubr.bf16.gmra.mrb[0].mxu0 %v711
        %v958 = vpop.f32.mrb[0].mxu0
        %v959 = vadd.f32 0.0, %v958
        %v960 = vpop.f32.mrb[0].mxu0
        %v961 = vpop.f32.mrb[0].mxu0
        %v962 = vadd.f32 0.0, %v961
        %v963 = vpop.f32.mrb[0].mxu0
        %964 = vmatprep.mubr.bf16.mxu0 0
        %965 = vmatmul.mubr.bf16.gmra.mrb[0].mxu0 %v714
        %v966 = vpop.f32.mrb[0].mxu0
        %v967 = vadd.f32 0.0, %v966
        %v968 = vpop.f32.mrb[0].mxu0
        %v969 = vpop.f32.mrb[0].mxu0
        %v970 = vadd.f32 0.0, %v969
        %v971 = vpop.f32.mrb[0].mxu0
        %972 = vmatprep.mubr.bf16.mxu0 0
        %973 = vmatmul.mubr.bf16.gmra.mrb[0].mxu0 %v717
        %v974 = vpop.f32.mrb[0].mxu0
        %v975 = vadd.f32 0.0, %v974
        %v976 = vpop.f32.mrb[0].mxu0
        %v977 = vpop.f32.mrb[0].mxu0
        %v978 = vadd.f32 0.0, %v977
        %v979 = vpop.f32.mrb[0].mxu0
        %980 = vmatprep.mubr.bf16.mxu0 0
        %981 = vmatmul.mubr.bf16.gmra.mrb[0].mxu0 %v720
        %v982 = vpop.f32.mrb[0].mxu0
        %v983 = vadd.f32 0.0, %v982
        %v984 = vpop.f32.mrb[0].mxu0
        %v985 = vpop.f32.mrb[0].mxu0
        %v986 = vadd.f32 0.0, %v985
        %v987 = vpop.f32.mrb[0].mxu0
        %988 = vmatprep.mubr.bf16.mxu0 0
        %989 = vmatmul.mubr.bf16.gmra.mrb[0].mxu0 %v723
        %v990 = vpop.f32.mrb[0].mxu0
        %v991 = vadd.f32 0.0, %v990
        %v992 = vpop.f32.mrb[0].mxu0
        %v993 = vpop.f32.mrb[0].mxu0
        %v994 = vadd.f32 0.0, %v993
        %v995 = vpop.f32.mrb[0].mxu0
        %996 = vmatprep.mubr.bf16.mxu0 0
        %997 = vmatmul.mubr.bf16.gmra.mrb[0].mxu0 %v726
        %v998 = vpop.f32.mrb[0].mxu0
        %v999 = vadd.f32 0.0, %v998
        %v1000 = vpop.f32.mrb[0].mxu0
        %v1001 = vpop.f32.mrb[0].mxu0
        %v1002 = vadd.f32 0.0, %v1001
        %v1003 = vpop.f32.mrb[0].mxu0
        %1004 = vmatprep.mubr.bf16.mxu0 0
        %1005 = vmatmul.mubr.bf16.gmra.mrb[0].mxu0 %v729
        %v1006 = vpop.f32.mrb[0].mxu0
        %v1007 = vadd.f32 0.0, %v1006
        %v1008 = vpop.f32.mrb[0].mxu0
        %v1009 = vpop.f32.mrb[0].mxu0
        %v1010 = vadd.f32 0.0, %v1009
        %v1011 = vpop.f32.mrb[0].mxu0
        %1012 = vmatprep.mubr.bf16.mxu0 0
        %1013 = vmatmul.mubr.bf16.gmra.mrb[0].mxu0 %v732
        %v1014 = vpop.f32.mrb[0].mxu0
        %v1015 = vadd.f32 0.0, %v1014
        %v1016 = vpop.f32.mrb[0].mxu0
        %v1017 = vpop.f32.mrb[0].mxu0
        %v1018 = vadd.f32 0.0, %v1017
        %v1019 = vpop.f32.mrb[0].mxu0
        %1020 = vmatprep.mubr.bf16.mxu0 0
        %1021 = vmatmul.mubr.bf16.gmra.mrb[0].mxu0 %v735
        %v1022 = vpop.f32.mrb[0].mxu0
        %v1023 = vadd.f32 0.0, %v1022
        %v1024 = vpop.f32.mrb[0].mxu0
        %v1025 = vpop.f32.mrb[0].mxu0
        %v1026 = vadd.f32 0.0, %v1025
        %v1027 = vpop.f32.mrb[0].mxu0
        %1028 = vmatprep.mubr.bf16.mxu0 0
        %1029 = vmatmul.mubr.bf16.gmra.mrb[0].mxu0 %v738
        %v1030 = vpop.f32.mrb[0].mxu0
        %v1031 = vadd.f32 0.0, %v1030
        %v1032 = vpop.f32.mrb[0].mxu0
        %v1033 = vpop.f32.mrb[0].mxu0
        %v1034 = vadd.f32 0.0, %v1033
        %v1035 = vpop.f32.mrb[0].mxu0
        %1036 = vmatprep.mubr.bf16.mxu0 0
        %1037 = vmatmul.mubr.bf16.gmra.mrb[0].mxu0 %v741
        %v1038 = vpop.f32.mrb[0].mxu0
        %v1039 = vadd.f32 0.0, %v1038
        %v1040 = vpop.f32.mrb[0].mxu0
        %v1041 = vpop.f32.mrb[0].mxu0
        %v1042 = vadd.f32 0.0, %v1041
        %v1043 = vpop.f32.mrb[0].mxu0
        %1044 = vmatprep.mubr.bf16.mxu0 0
        %1045 = vmatmul.mubr.bf16.gmra.mrb[0].mxu0 %v744
        %v1046 = vpop.f32.mrb[0].mxu0
        %v1047 = vadd.f32 0.0, %v1046
        %v1048 = vpop.f32.mrb[0].mxu0
        %v1049 = vpop.f32.mrb[0].mxu0
        %v1050 = vadd.f32 0.0, %v1049
        %v1051 = vpop.f32.mrb[0].mxu0
        %1052 = vmatprep.mubr.bf16.mxu0 0
        %1053 = vmatmul.mubr.bf16.gmra.mrb[0].mxu0 %v747
        %v1054 = vpop.f32.mrb[0].mxu0
        %v1055 = vadd.f32 0.0, %v1054
        %v1056 = vpop.f32.mrb[0].mxu0
        %v1057 = vpop.f32.mrb[0].mxu0
        %v1058 = vadd.f32 0.0, %v1057
        %v1059 = vpop.f32.mrb[0].mxu0
        %1060 = vmatprep.mubr.bf16.mxu0 0
        %1061 = vmatmul.mubr.bf16.gmra.mrb[0].mxu0 %v750
        %v1062 = vpop.f32.mrb[0].mxu0
        %v1063 = vadd.f32 0.0, %v1062
        %v1064 = vpop.f32.mrb[0].mxu0
        %v1065 = vpop.f32.mrb[0].mxu0
        %v1066 = vadd.f32 0.0, %v1065
        %v1067 = vpop.f32.mrb[0].mxu0
        %1068 = vmatprep.mubr.bf16.mxu0 0
        %1069 = vmatmul.mubr.bf16.gmra.mrb[0].mxu0 %v753
        %v1070 = vpop.f32.mrb[0].mxu0
        %v1071 = vadd.f32 0.0, %v1070
        %v1072 = vpop.f32.mrb[0].mxu0
        %v1073 = vpop.f32.mrb[0].mxu0
        %v1074 = vadd.f32 0.0, %v1073
        %v1075 = vpop.f32.mrb[0].mxu0
        %1076 = vmatprep.mubr.bf16.mxu0 0
        %1077 = vmatmul.mubr.bf16.gmra.mrb[0].mxu0 %v756
        %v1078 = vpop.f32.mrb[0].mxu0
        %v1079 = vadd.f32 0.0, %v1078
        %v1080 = vpop.f32.mrb[0].mxu0
        %v1081 = vpop.f32.mrb[0].mxu0
        %v1082 = vadd.f32 0.0, %v1081
        %v1083 = vpop.f32.mrb[0].mxu0
        %1084 = vmatprep.mubr.bf16.mxu0 0
        %1085 = vmatmul.mubr.bf16.gmra.mrb[0].mxu0 %v759
        %v1086 = vpop.f32.mrb[0].mxu0
        %v1087 = vadd.f32 0.0, %v1086
        %v1088 = vpop.f32.mrb[0].mxu0
        %v1089 = vpop.f32.mrb[0].mxu0
        %v1090 = vadd.f32 0.0, %v1089
        %v1091 = vpop.f32.mrb[0].mxu0
        %1092 = vmatprep.mubr.bf16.mxu0 0
        %1093 = vmatmul.mubr.bf16.gmra.mrb[0].mxu0 %v762
        %v1094 = vpop.f32.mrb[0].mxu0
        %v1095 = vadd.f32 0.0, %v1094
        %v1096 = vpop.f32.mrb[0].mxu0
        %v1097 = vpop.f32.mrb[0].mxu0
        %v1098 = vadd.f32 0.0, %v1097
        %v1099 = vpop.f32.mrb[0].mxu0
        %1100 = vmatprep.mubr.bf16.mxu0 0
        %1101 = vmatmul.mubr.bf16.gmra.mrb[0].mxu0 %v765
        %v1102 = vpop.f32.mrb[0].mxu0
        %v1103 = vadd.f32 0.0, %v1102
        %v1104 = vpop.f32.mrb[0].mxu0
        %v1105 = vpop.f32.mrb[0].mxu0
        %v1106 = vadd.f32 0.0, %v1105
        %v1107 = vpop.f32.mrb[0].mxu0
        %1108 = vmatprep.mubr.bf16.mxu0 0
        %1109 = vmatmul.mubr.bf16.gmra.mrb[0].mxu0 %v768
        %v1110 = vpop.f32.mrb[0].mxu0
        %v1111 = vadd.f32 0.0, %v1110
        %v1112 = vpop.f32.mrb[0].mxu0
        %v1113 = vpop.f32.mrb[0].mxu0
        %v1114 = vadd.f32 0.0, %v1113
        %v1115 = vpop.f32.mrb[0].mxu0
        %1116 = vmatprep.mubr.bf16.mxu0 0
        %1117 = vmatmul.mubr.bf16.gmra.mrb[0].mxu0 %v771
        %v1118 = vpop.f32.mrb[0].mxu0
        %v1119 = vadd.f32 0.0, %v1118
        %v1120 = vpop.f32.mrb[0].mxu0
        %v1121 = vpop.f32.mrb[0].mxu0
        %v1122 = vadd.f32 0.0, %v1121
        %v1123 = vpop.f32.mrb[0].mxu0
        %1124 = vmatprep.mubr.bf16.mxu0 0
        %1125 = vmatmul.mubr.bf16.gmra.mrb[0].mxu0 %v774
        %v1126 = vpop.f32.mrb[0].mxu0
        %v1127 = vadd.f32 0.0, %v1126
        %v1128 = vpop.f32.mrb[0].mxu0
        %v1129 = vpop.f32.mrb[0].mxu0
        %v1130 = vadd.f32 0.0, %v1129
        %v1131 = vpop.f32.mrb[0].mxu0
        %1132 = vmatprep.mubr.bf16.mxu0 0
        %1133 = vmatmul.mubr.bf16.gmra.mrb[0].mxu0 %v777
        %v1134 = vpop.f32.mrb[0].mxu0
        %v1135 = vadd.f32 0.0, %v1134
        %v1136 = vpop.f32.mrb[0].mxu0
        %v1137 = vpop.f32.mrb[0].mxu0
        %v1138 = vadd.f32 0.0, %v1137
        %v1139 = vpop.f32.mrb[0].mxu0
        %1140 = vmatprep.mubr.bf16.mxu0 0
        %1141 = vmatmul.mubr.bf16.gmra.mrb[0].mxu0 %v780
        %v1142 = vpop.f32.mrb[0].mxu0
        %v1143 = vadd.f32 0.0, %v1142
        %v1144 = vpop.f32.mrb[0].mxu0
        %v1145 = vpop.f32.mrb[0].mxu0
        %v1146 = vadd.f32 0.0, %v1145
        %v1147 = vpop.f32.mrb[0].mxu0
        %1148 = vmatprep.mubr.bf16.mxu0 0
        %1149 = vmatmul.mubr.bf16.gmra.mrb[0].mxu0 %v783
        %v1150 = vpop.f32.mrb[0].mxu0
        %v1151 = vadd.f32 0.0, %v1150
        %v1152 = vpop.f32.mrb[0].mxu0
        %v1153 = vpop.f32.mrb[0].mxu0
        %v1154 = vadd.f32 0.0, %v1153
        %v1155 = vpop.f32.mrb[0].mxu0
        %1156 = vmatprep.mubr.bf16.mxu0 0
        %1157 = vmatmul.mubr.bf16.gmra.mrb[0].mxu0 %v786
        %v1158 = vpop.f32.mrb[0].mxu0
        %v1159 = vadd.f32 0.0, %v1158
        %v1160 = vpop.f32.mrb[0].mxu0
        %v1161 = vpop.f32.mrb[0].mxu0
        %v1162 = vadd.f32 0.0, %v1161
        %v1163 = vpop.f32.mrb[0].mxu0
        %1164 = vmatprep.mubr.bf16.mxu0 0
        %1165 = vmatmul.mubr.bf16.gmra.mrb[0].mxu0 %v789
        %v1166 = vpop.f32.mrb[0].mxu0
        %v1167 = vadd.f32 0.0, %v1166
        %v1168 = vpop.f32.mrb[0].mxu0
        %v1169 = vpop.f32.mrb[0].mxu0
        %v1170 = vadd.f32 0.0, %v1169
        %v1171 = vpop.f32.mrb[0].mxu0
        %1172 = vmatprep.mubr.bf16.mxu0 0
        %1173 = vmatmul.mubr.bf16.gmra.mrb[0].mxu0 %v792
        %v1174 = vpop.f32.mrb[0].mxu0
        %v1175 = vadd.f32 0.0, %v1174
        %v1176 = vpop.f32.mrb[0].mxu0
        %v1177 = vpop.f32.mrb[0].mxu0
        %v1178 = vadd.f32 0.0, %v1177
        %v1179 = vpop.f32.mrb[0].mxu0
        %1180 = vmatprep.mubr.bf16.mxu0 0
        %1181 = vmatmul.mubr.bf16.gmra.mrb[0].mxu0 %v795
        %v1182 = vpop.f32.mrb[0].mxu0
        %v1183 = vadd.f32 0.0, %v1182
        %v1184 = vpop.f32.mrb[0].mxu0
        %v1185 = vpop.f32.mrb[0].mxu0
        %v1186 = vadd.f32 0.0, %v1185
        %v1187 = vpop.f32.mrb[0].mxu0
        %1188 = vmatprep.mubr.bf16.mxu0 0
        %1189 = vmatmul.mubr.bf16.gmra.mrb[0].mxu0 %v798
        %v1190 = vpop.f32.mrb[0].mxu0
        %v1191 = vadd.f32 0.0, %v1190
        %v1192 = vpop.f32.mrb[0].mxu0
        %v1193 = vpop.f32.mrb[0].mxu0
        %v1194 = vadd.f32 0.0, %v1193
        %v1195 = vpop.f32.mrb[0].mxu0
        %1196 = vmatprep.mubr.bf16.mxu0 0
        %1197 = vmatmul.mubr.bf16.gmra.mrb[0].mxu0 %v801
        %v1198 = vpop.f32.mrb[0].mxu0
        %v1199 = vadd.f32 0.0, %v1198
        %v1200 = vpop.f32.mrb[0].mxu0
        %v1201 = vpop.f32.mrb[0].mxu0
        %v1202 = vadd.f32 0.0, %v1201
        %v1203 = vpop.f32.mrb[0].mxu0
        %1204 = vmatprep.mubr.bf16.mxu0 0
        %1205 = vmatmul.mubr.bf16.gmra.mrb[0].mxu0 %v804
        %v1206 = vpop.f32.mrb[0].mxu0
        %v1207 = vadd.f32 0.0, %v1206
        %v1208 = vpop.f32.mrb[0].mxu0
        %v1209 = vpop.f32.mrb[0].mxu0
        %v1210 = vadd.f32 0.0, %v1209
        %v1211 = vpop.f32.mrb[0].mxu0
        %1212 = vmatprep.mubr.bf16.mxu0 0
        %1213 = vmatmul.mubr.bf16.gmra.mrb[0].mxu0 %v807
        %v1214 = vpop.f32.mrb[0].mxu0
        %v1215 = vadd.f32 0.0, %v1214
        %v1216 = vpop.f32.mrb[0].mxu0
        %v1217 = vpop.f32.mrb[0].mxu0
        %v1218 = vadd.f32 0.0, %v1217
        %v1219 = vpop.f32.mrb[0].mxu0
        %1220 = vmatprep.mubr.bf16.mxu0 0
        %1221 = vmatmul.mubr.bf16.gmra.mrb[0].mxu0 %v810
        %v1222 = vpop.f32.mrb[0].mxu0
        %v1223 = vadd.f32 0.0, %v1222
        %v1224 = vpop.f32.mrb[0].mxu0
        %v1225 = vpop.f32.mrb[0].mxu0
        %v1226 = vadd.f32 0.0, %v1225
        %v1227 = vpop.f32.mrb[0].mxu0
        %1228 = vmatprep.mubr.bf16.mxu0 0
        %1229 = vmatmul.mubr.bf16.gmra.mrb[0].mxu0 %v813
        %v1230 = vpop.f32.mrb[0].mxu0
        %v1231 = vadd.f32 0.0, %v1230
        %v1232 = vpop.f32.mrb[0].mxu0
        %v1233 = vpop.f32.mrb[0].mxu0
        %v1234 = vadd.f32 0.0, %v1233
        %v1235 = vpop.f32.mrb[0].mxu0
        %1236 = vmatprep.mubr.bf16.mxu0 0
        %1237 = vmatmul.mubr.bf16.gmra.mrb[0].mxu0 %v816
        %v1238 = vpop.f32.mrb[0].mxu0
        %v1239 = vadd.f32 0.0, %v1238
        %v1240 = vpop.f32.mrb[0].mxu0
        %v1241 = vpop.f32.mrb[0].mxu0
        %v1242 = vadd.f32 0.0, %v1241
        %v1243 = vpop.f32.mrb[0].mxu0
        %1244 = vmatprep.mubr.bf16.mxu0 0
        %1245 = vmatmul.mubr.bf16.gmra.mrb[0].mxu0 %v819
        %v1246 = vpop.f32.mrb[0].mxu0
        %v1247 = vadd.f32 0.0, %v1246
        %v1248 = vpop.f32.mrb[0].mxu0
        %v1249 = vpop.f32.mrb[0].mxu0
        %v1250 = vadd.f32 0.0, %v1249
        %v1251 = vpop.f32.mrb[0].mxu0
        %1252 = vmatprep.mubr.bf16.mxu0 0
        %1253 = vmatmul.mubr.bf16.gmra.mrb[0].mxu0 %v822
        %v1254 = vpop.f32.mrb[0].mxu0
        %v1255 = vadd.f32 0.0, %v1254
        %v1256 = vpop.f32.mrb[0].mxu0
        %v1257 = vpop.f32.mrb[0].mxu0
        %v1258 = vadd.f32 0.0, %v1257
        %v1259 = vpop.f32.mrb[0].mxu0
        %1260 = vmatprep.mubr.bf16.mxu0 0
        %1261 = vmatmul.mubr.bf16.gmra.mrb[0].mxu0 %v825
        %v1262 = vpop.f32.mrb[0].mxu0
        %v1263 = vadd.f32 0.0, %v1262
        %v1264 = vpop.f32.mrb[0].mxu0
        %v1265 = vpop.f32.mrb[0].mxu0
        %v1266 = vadd.f32 0.0, %v1265
        %v1267 = vpop.f32.mrb[0].mxu0
        %1268 = vmatprep.mubr.bf16.mxu0 0
        %1269 = vmatmul.mubr.bf16.gmra.mrb[0].mxu0 %v828
        %v1270 = vpop.f32.mrb[0].mxu0
        %v1271 = vadd.f32 0.0, %v1270
        %v1272 = vpop.f32.mrb[0].mxu0
        %v1273 = vpop.f32.mrb[0].mxu0
        %v1274 = vadd.f32 0.0, %v1273
        %v1275 = vpop.f32.mrb[0].mxu0
        %1276 = vmatprep.mubr.bf16.mxu0 0
        %1277 = vmatmul.mubr.bf16.gmra.mrb[0].mxu0 %v831
        %v1278 = vpop.f32.mrb[0].mxu0
        %v1279 = vadd.f32 0.0, %v1278
        %v1280 = vpop.f32.mrb[0].mxu0
        %v1281 = vpop.f32.mrb[0].mxu0
        %v1282 = vadd.f32 0.0, %v1281
        %v1283 = vpop.f32.mrb[0].mxu0
        %1284 = vmatprep.mubr.bf16.mxu0 0
        %1285 = vmatmul.mubr.bf16.gmra.mrb[0].mxu0 %v834
        %v1286 = vpop.f32.mrb[0].mxu0
        %v1287 = vadd.f32 0.0, %v1286
        %v1288 = vpop.f32.mrb[0].mxu0
        %v1289 = vpop.f32.mrb[0].mxu0
        %v1290 = vadd.f32 0.0, %v1289
        %v1291 = vpop.f32.mrb[0].mxu0
        %1292 = vmatprep.mubr.bf16.mxu0 0
        %1293 = vmatmul.mubr.bf16.gmra.mrb[0].mxu0 %v837
        %v1294 = vpop.f32.mrb[0].mxu0
        %v1295 = vadd.f32 0.0, %v1294
        %v1296 = vpop.f32.mrb[0].mxu0
        %v1297 = vpop.f32.mrb[0].mxu0
        %v1298 = vadd.f32 0.0, %v1297
        %v1299 = vpop.f32.mrb[0].mxu0
        %1300 = vmatprep.mubr.bf16.mxu0 0
        %1301 = vmatmul.mubr.bf16.gmra.mrb[0].mxu0 %v840
        %v1302 = vpop.f32.mrb[0].mxu0
        %v1303 = vadd.f32 0.0, %v1302
        %v1304 = vpop.f32.mrb[0].mxu0
        %v1305 = vpop.f32.mrb[0].mxu0
        %v1306 = vadd.f32 0.0, %v1305
        %v1307 = vpop.f32.mrb[0].mxu0
        %1308 = vmatprep.mubr.bf16.mxu0 0
        %1309 = vmatmul.mubr.bf16.gmra.mrb[0].mxu0 %v843
        %v1310 = vpop.f32.mrb[0].mxu0
        %v1311 = vadd.f32 0.0, %v1310
        %v1312 = vpop.f32.mrb[0].mxu0
        %v1313 = vpop.f32.mrb[0].mxu0
        %v1314 = vadd.f32 0.0, %v1313
        %v1315 = vpop.f32.mrb[0].mxu0
        %1316 = vmatprep.mubr.bf16.mxu0 0
        %1317 = vmatmul.mubr.bf16.gmra.mrb[0].mxu0 %v846
        %v1318 = vpop.f32.mrb[0].mxu0
        %v1319 = vadd.f32 0.0, %v1318
        %v1320 = vpop.f32.mrb[0].mxu0
        %v1321 = vpop.f32.mrb[0].mxu0
        %v1322 = vadd.f32 0.0, %v1321
        %v1323 = vpop.f32.mrb[0].mxu0
        %1324 = vmatprep.mubr.bf16.mxu0 0
        %1325 = vmatmul.mubr.bf16.gmra.mrb[0].mxu0 %v849
        %v1326 = vpop.f32.mrb[0].mxu0
        %v1327 = vadd.f32 0.0, %v1326
        %v1328 = vpop.f32.mrb[0].mxu0
        %v1329 = vpop.f32.mrb[0].mxu0
        %v1330 = vadd.f32 0.0, %v1329
        %v1331 = vpop.f32.mrb[0].mxu0
        %1332 = vmatprep.mubr.bf16.mxu0 0
        %1333 = vmatmul.mubr.bf16.gmra.mrb[0].mxu0 %v852
        %v1334 = vpop.f32.mrb[0].mxu0
        %v1335 = vadd.f32 0.0, %v1334
        %v1336 = vpop.f32.mrb[0].mxu0
        %v1337 = vpop.f32.mrb[0].mxu0
        %v1338 = vadd.f32 0.0, %v1337
        %v1339 = vpop.f32.mrb[0].mxu0
        %1340 = vmatprep.mubr.bf16.mxu0 0
        %1341 = vmatmul.mubr.bf16.gmra.mrb[0].mxu0 %v855
        %v1342 = vpop.f32.mrb[0].mxu0
        %v1343 = vadd.f32 0.0, %v1342
        %v1344 = vpop.f32.mrb[0].mxu0
        %v1345 = vpop.f32.mrb[0].mxu0
        %v1346 = vadd.f32 0.0, %v1345
        %v1347 = vpop.f32.mrb[0].mxu0
        %1348 = vmatprep.mubr.bf16.mxu0 0
        %1349 = vmatmul.mubr.bf16.gmra.mrb[0].mxu0 %v858
        %v1350 = vpop.f32.mrb[0].mxu0
        %v1351 = vadd.f32 0.0, %v1350
        %v1352 = vpop.f32.mrb[0].mxu0
        %v1353 = vpop.f32.mrb[0].mxu0
        %v1354 = vadd.f32 0.0, %v1353
        %v1355 = vpop.f32.mrb[0].mxu0
        %1356 = vmatprep.mubr.bf16.mxu0 0
        %1357 = vmatmul.mubr.bf16.gmra.mrb[0].mxu0 %v861
        %v1358 = vpop.f32.mrb[0].mxu0
        %v1359 = vadd.f32 0.0, %v1358
        %v1360 = vpop.f32.mrb[0].mxu0
        %v1361 = vpop.f32.mrb[0].mxu0
        %v1362 = vadd.f32 0.0, %v1361
        %v1363 = vpop.f32.mrb[0].mxu0
        %1364 = vmatprep.mubr.bf16.mxu0 0
        %1365 = vmatmul.mubr.bf16.gmra.mrb[0].mxu0 %v864
        %v1366 = vpop.f32.mrb[0].mxu0
        %v1367 = vadd.f32 0.0, %v1366
        %v1368 = vpop.f32.mrb[0].mxu0
        %v1369 = vpop.f32.mrb[0].mxu0
        %v1370 = vadd.f32 0.0, %v1369
        %v1371 = vpop.f32.mrb[0].mxu0
        %1372 = vmatprep.mubr.bf16.mxu0 0
        %1373 = vmatmul.mubr.bf16.gmra.mrb[0].mxu0 %v867
        %v1374 = vpop.f32.mrb[0].mxu0
        %v1375 = vadd.f32 0.0, %v1374
        %v1376 = vpop.f32.mrb[0].mxu0
        %v1377 = vpop.f32.mrb[0].mxu0
        %v1378 = vadd.f32 0.0, %v1377
        %v1379 = vpop.f32.mrb[0].mxu0
        %1380 = vmatprep.mubr.bf16.mxu0 0
        %1381 = vmatmul.mubr.bf16.gmra.mrb[0].mxu0 %v870
        %v1382 = vpop.f32.mrb[0].mxu0
        %v1383 = vadd.f32 0.0, %v1382
        %v1384 = vpop.f32.mrb[0].mxu0
        %v1385 = vpop.f32.mrb[0].mxu0
        %v1386 = vadd.f32 0.0, %v1385
        %v1387 = vpop.f32.mrb[0].mxu0
        %1388 = vmatprep.mubr.bf16.mxu0 0
        %1389 = vmatmul.mubr.bf16.gmra.mrb[0].mxu0 %v873
        %v1390 = vpop.f32.mrb[0].mxu0
        %v1391 = vadd.f32 0.0, %v1390
        %v1392 = vpop.f32.mrb[0].mxu0
        %v1393 = vpop.f32.mrb[0].mxu0
        %v1394 = vadd.f32 0.0, %v1393
        %v1395 = vpop.f32.mrb[0].mxu0
        %1396 = vmatprep.mubr.bf16.mxu0 0
        %1397 = vmatmul.mubr.bf16.gmra.mrb[0].mxu0 %v876
        %v1398 = vpop.f32.mrb[0].mxu0
        %v1399 = vadd.f32 0.0, %v1398
        %v1400 = vpop.f32.mrb[0].mxu0
        %v1401 = vpop.f32.mrb[0].mxu0
        %v1402 = vadd.f32 0.0, %v1401
        %v1403 = vpop.f32.mrb[0].mxu0
        %1404 = vmatprep.mubr.bf16.mxu0 0
        %1405 = vmatmul.mubr.bf16.gmra.mrb[0].mxu0 %v879
        %v1406 = vpop.f32.mrb[0].mxu0
        %v1407 = vadd.f32 0.0, %v1406
        %v1408 = vpop.f32.mrb[0].mxu0
        %v1409 = vpop.f32.mrb[0].mxu0
        %v1410 = vadd.f32 0.0, %v1409
        %v1411 = vpop.f32.mrb[0].mxu0
        %1412 = vmatprep.mubr.bf16.mxu0 0
        %1413 = vmatmul.mubr.bf16.gmra.mrb[0].mxu0 %v882
        %v1414 = vpop.f32.mrb[0].mxu0
        %v1415 = vadd.f32 0.0, %v1414
        %v1416 = vpop.f32.mrb[0].mxu0
        %v1417 = vpop.f32.mrb[0].mxu0
        %v1418 = vadd.f32 0.0, %v1417
        %v1419 = vpop.f32.mrb[0].mxu0
        %1420 = vmatprep.mubr.bf16.mxu0 0
        %1421 = vmatmul.mubr.bf16.gmra.mrb[0].mxu0 %v885
        %v1422 = vpop.f32.mrb[0].mxu0
        %v1423 = vadd.f32 0.0, %v1422
        %v1424 = vpop.f32.mrb[0].mxu0
        %v1425 = vpop.f32.mrb[0].mxu0
        %v1426 = vadd.f32 0.0, %v1425
        %v1427 = vpop.f32.mrb[0].mxu0
        %1428 = vmatprep.mubr.bf16.mxu0 0
        %1429 = vmatmul.mubr.bf16.gmra.mrb[0].mxu0 %v888
        %v1430 = vpop.f32.mrb[0].mxu0
        %v1431 = vadd.f32 0.0, %v1430
        %v1432 = vpop.f32.mrb[0].mxu0
        %v1433 = vpop.f32.mrb[0].mxu0
        %v1434 = vadd.f32 0.0, %v1433
        %v1435 = vpop.f32.mrb[0].mxu0
        %1436 = vmatprep.mubr.bf16.mxu0 0
        %1437 = vmatmul.mubr.bf16.gmra.mrb[0].mxu0 %v891
        %v1438 = vpop.f32.mrb[0].mxu0
        %v1439 = vadd.f32 0.0, %v1438
        %v1440 = vpop.f32.mrb[0].mxu0
        %v1441 = vpop.f32.mrb[0].mxu0
        %v1442 = vadd.f32 0.0, %v1441
        %v1443 = vpop.f32.mrb[0].mxu0
        %1444 = vdwg.mxu0
        %v1445 = vld [vmem:[#allocation4] sm:$0x1]
        %v1446 = vlaneseq
        %v1447 = vshrl.u32 %v1446, 7
        %v1448 = vsub.s32 0, %v1447
        %v1449 = vrot.slane %v1445, %v1448
        %v1450 = vmul.f32 %v935, %v1449
        %v1451 = vmul.f32 %v938, %v1449
        %v1452 = vmul.f32 %v943, %v1449
        %v1453 = vmul.f32 %v946, %v1449
        %v1454 = vmul.f32 %v951, %v1449
        %v1455 = vmul.f32 %v954, %v1449
        %v1456 = vmul.f32 %v959, %v1449
        %v1457 = vmul.f32 %v962, %v1449
        %v1458 = vmul.f32 %v967, %v1449
        %v1459 = vmul.f32 %v970, %v1449
        %v1460 = vmul.f32 %v975, %v1449
        %v1461 = vmul.f32 %v978, %v1449
        %v1462 = vmul.f32 %v983, %v1449
        %v1463 = vmul.f32 %v986, %v1449
        %v1464 = vmul.f32 %v991, %v1449
        %v1465 = vmul.f32 %v994, %v1449
        %v1466 = vmul.f32 %v999, %v1449
        %v1467 = vmul.f32 %v1002, %v1449
        %v1468 = vmul.f32 %v1007, %v1449
        %v1469 = vmul.f32 %v1010, %v1449
        %v1470 = vmul.f32 %v1015, %v1449
        %v1471 = vmul.f32 %v1018, %v1449
        %v1472 = vmul.f32 %v1023, %v1449
        %v1473 = vmul.f32 %v1026, %v1449
        %v1474 = vmul.f32 %v1031, %v1449
        %v1475 = vmul.f32 %v1034, %v1449
        %v1476 = vmul.f32 %v1039, %v1449
        %v1477 = vmul.f32 %v1042, %v1449
        %v1478 = vmul.f32 %v1047, %v1449
        %v1479 = vmul.f32 %v1050, %v1449
        %v1480 = vmul.f32 %v1055, %v1449
        %v1481 = vmul.f32 %v1058, %v1449
        %v1482 = vmul.f32 %v1063, %v1449
        %v1483 = vmul.f32 %v1066, %v1449
        %v1484 = vmul.f32 %v1071, %v1449
        %v1485 = vmul.f32 %v1074, %v1449
        %v1486 = vmul.f32 %v1079, %v1449
        %v1487 = vmul.f32 %v1082, %v1449
        %v1488 = vmul.f32 %v1087, %v1449
        %v1489 = vmul.f32 %v1090, %v1449
        %v1490 = vmul.f32 %v1095, %v1449
        %v1491 = vmul.f32 %v1098, %v1449
        %v1492 = vmul.f32 %v1103, %v1449
        %v1493 = vmul.f32 %v1106, %v1449
        %v1494 = vmul.f32 %v1111, %v1449
        %v1495 = vmul.f32 %v1114, %v1449
        %v1496 = vmul.f32 %v1119, %v1449
        %v1497 = vmul.f32 %v1122, %v1449
        %v1498 = vmul.f32 %v1127, %v1449
        %v1499 = vmul.f32 %v1130, %v1449
        %v1500 = vmul.f32 %v1135, %v1449
        %v1501 = vmul.f32 %v1138, %v1449
        %v1502 = vmul.f32 %v1143, %v1449
        %v1503 = vmul.f32 %v1146, %v1449
        %v1504 = vmul.f32 %v1151, %v1449
        %v1505 = vmul.f32 %v1154, %v1449
        %v1506 = vmul.f32 %v1159, %v1449
        %v1507 = vmul.f32 %v1162, %v1449
        %v1508 = vmul.f32 %v1167, %v1449
        %v1509 = vmul.f32 %v1170, %v1449
        %v1510 = vmul.f32 %v1175, %v1449
        %v1511 = vmul.f32 %v1178, %v1449
        %v1512 = vmul.f32 %v1183, %v1449
        %v1513 = vmul.f32 %v1186, %v1449
        %v1514 = vmul.f32 %v1191, %v1449
        %v1515 = vmul.f32 %v1194, %v1449
        %v1516 = vmul.f32 %v1199, %v1449
        %v1517 = vmul.f32 %v1202, %v1449
        %v1518 = vmul.f32 %v1207, %v1449
        %v1519 = vmul.f32 %v1210, %v1449
        %v1520 = vmul.f32 %v1215, %v1449
        %v1521 = vmul.f32 %v1218, %v1449
        %v1522 = vmul.f32 %v1223, %v1449
        %v1523 = vmul.f32 %v1226, %v1449
        %v1524 = vmul.f32 %v1231, %v1449
        %v1525 = vmul.f32 %v1234, %v1449
        %v1526 = vmul.f32 %v1239, %v1449
        %v1527 = vmul.f32 %v1242, %v1449
        %v1528 = vmul.f32 %v1247, %v1449
        %v1529 = vmul.f32 %v1250, %v1449
        %v1530 = vmul.f32 %v1255, %v1449
        %v1531 = vmul.f32 %v1258, %v1449
        %v1532 = vmul.f32 %v1263, %v1449
        %v1533 = vmul.f32 %v1266, %v1449
        %v1534 = vmul.f32 %v1271, %v1449
        %v1535 = vmul.f32 %v1274, %v1449
        %v1536 = vmul.f32 %v1279, %v1449
        %v1537 = vmul.f32 %v1282, %v1449
        %v1538 = vmul.f32 %v1287, %v1449
        %v1539 = vmul.f32 %v1290, %v1449
        %v1540 = vmul.f32 %v1295, %v1449
        %v1541 = vmul.f32 %v1298, %v1449
        %v1542 = vmul.f32 %v1303, %v1449
        %v1543 = vmul.f32 %v1306, %v1449
        %v1544 = vmul.f32 %v1311, %v1449
        %v1545 = vmul.f32 %v1314, %v1449
        %v1546 = vmul.f32 %v1319, %v1449
        %v1547 = vmul.f32 %v1322, %v1449
        %v1548 = vmul.f32 %v1327, %v1449
        %v1549 = vmul.f32 %v1330, %v1449
        %v1550 = vmul.f32 %v1335, %v1449
        %v1551 = vmul.f32 %v1338, %v1449
        %v1552 = vmul.f32 %v1343, %v1449
        %v1553 = vmul.f32 %v1346, %v1449
        %v1554 = vmul.f32 %v1351, %v1449
        %v1555 = vmul.f32 %v1354, %v1449
        %v1556 = vmul.f32 %v1359, %v1449
        %v1557 = vmul.f32 %v1362, %v1449
        %v1558 = vmul.f32 %v1367, %v1449
        %v1559 = vmul.f32 %v1370, %v1449
        %v1560 = vmul.f32 %v1375, %v1449
        %v1561 = vmul.f32 %v1378, %v1449
        %v1562 = vmul.f32 %v1383, %v1449
        %v1563 = vmul.f32 %v1386, %v1449
        %v1564 = vmul.f32 %v1391, %v1449
        %v1565 = vmul.f32 %v1394, %v1449
        %v1566 = vmul.f32 %v1399, %v1449
        %v1567 = vmul.f32 %v1402, %v1449
        %v1568 = vmul.f32 %v1407, %v1449
        %v1569 = vmul.f32 %v1410, %v1449
        %v1570 = vmul.f32 %v1415, %v1449
        %v1571 = vmul.f32 %v1418, %v1449
        %v1572 = vmul.f32 %v1423, %v1449
        %v1573 = vmul.f32 %v1426, %v1449
        %v1574 = vmul.f32 %v1431, %v1449
        %v1575 = vmul.f32 %v1434, %v1449
        %v1576 = vmul.f32 %v1439, %v1449
        %v1577 = vmul.f32 %v1442, %v1449
        %v1578 = vld [vmem:[#allocation4 + $0x1] sm:$0x1]
        %v1579 = vlaneseq
        %v1580 = vshrl.u32 %v1579, 7
        %v1581 = vsub.s32 0, %v1580
        %v1582 = vrot.slane %v1578, %v1581
        %v1583 = vadd.f32 %v1450, %v1582
        %v1584 = vadd.f32 %v1451, %v1582
        %v1585 = vadd.f32 %v1452, %v1582
        %v1586 = vadd.f32 %v1453, %v1582
        %v1587 = vadd.f32 %v1454, %v1582
        %v1588 = vadd.f32 %v1455, %v1582
        %v1589 = vadd.f32 %v1456, %v1582
        %v1590 = vadd.f32 %v1457, %v1582
        %v1591 = vadd.f32 %v1458, %v1582
        %v1592 = vadd.f32 %v1459, %v1582
        %v1593 = vadd.f32 %v1460, %v1582
        %v1594 = vadd.f32 %v1461, %v1582
        %v1595 = vadd.f32 %v1462, %v1582
        %v1596 = vadd.f32 %v1463, %v1582
        %v1597 = vadd.f32 %v1464, %v1582
        %v1598 = vadd.f32 %v1465, %v1582
        %v1599 = vadd.f32 %v1466, %v1582
        %v1600 = vadd.f32 %v1467, %v1582
        %v1601 = vadd.f32 %v1468, %v1582
        %v1602 = vadd.f32 %v1469, %v1582
        %v1603 = vadd.f32 %v1470, %v1582
        %v1604 = vadd.f32 %v1471, %v1582
        %v1605 = vadd.f32 %v1472, %v1582
        %v1606 = vadd.f32 %v1473, %v1582
        %v1607 = vadd.f32 %v1474, %v1582
        %v1608 = vadd.f32 %v1475, %v1582
        %v1609 = vadd.f32 %v1476, %v1582
        %v1610 = vadd.f32 %v1477, %v1582
        %v1611 = vadd.f32 %v1478, %v1582
        %v1612 = vadd.f32 %v1479, %v1582
        %v1613 = vadd.f32 %v1480, %v1582
        %v1614 = vadd.f32 %v1481, %v1582
        %v1615 = vadd.f32 %v1482, %v1582
        %v1616 = vadd.f32 %v1483, %v1582
        %v1617 = vadd.f32 %v1484, %v1582
        %v1618 = vadd.f32 %v1485, %v1582
        %v1619 = vadd.f32 %v1486, %v1582
        %v1620 = vadd.f32 %v1487, %v1582
        %v1621 = vadd.f32 %v1488, %v1582
        %v1622 = vadd.f32 %v1489, %v1582
        %v1623 = vadd.f32 %v1490, %v1582
        %v1624 = vadd.f32 %v1491, %v1582
        %v1625 = vadd.f32 %v1492, %v1582
        %v1626 = vadd.f32 %v1493, %v1582
        %v1627 = vadd.f32 %v1494, %v1582
        %v1628 = vadd.f32 %v1495, %v1582
        %v1629 = vadd.f32 %v1496, %v1582
        %v1630 = vadd.f32 %v1497, %v1582
        %v1631 = vadd.f32 %v1498, %v1582
        %v1632 = vadd.f32 %v1499, %v1582
        %v1633 = vadd.f32 %v1500, %v1582
        %v1634 = vadd.f32 %v1501, %v1582
        %v1635 = vadd.f32 %v1502, %v1582
        %v1636 = vadd.f32 %v1503, %v1582
        %v1637 = vadd.f32 %v1504, %v1582
        %v1638 = vadd.f32 %v1505, %v1582
        %v1639 = vadd.f32 %v1506, %v1582
        %v1640 = vadd.f32 %v1507, %v1582
        %v1641 = vadd.f32 %v1508, %v1582
        %v1642 = vadd.f32 %v1509, %v1582
        %v1643 = vadd.f32 %v1510, %v1582
        %v1644 = vadd.f32 %v1511, %v1582
        %v1645 = vadd.f32 %v1512, %v1582
        %v1646 = vadd.f32 %v1513, %v1582
        %v1647 = vadd.f32 %v1514, %v1582
        %v1648 = vadd.f32 %v1515, %v1582
        %v1649 = vadd.f32 %v1516, %v1582
        %v1650 = vadd.f32 %v1517, %v1582
        %v1651 = vadd.f32 %v1518, %v1582
        %v1652 = vadd.f32 %v1519, %v1582
        %v1653 = vadd.f32 %v1520, %v1582
        %v1654 = vadd.f32 %v1521, %v1582
        %v1655 = vadd.f32 %v1522, %v1582
        %v1656 = vadd.f32 %v1523, %v1582
        %v1657 = vadd.f32 %v1524, %v1582
        %v1658 = vadd.f32 %v1525, %v1582
        %v1659 = vadd.f32 %v1526, %v1582
        %v1660 = vadd.f32 %v1527, %v1582
        %v1661 = vadd.f32 %v1528, %v1582
        %v1662 = vadd.f32 %v1529, %v1582
        %v1663 = vadd.f32 %v1530, %v1582
        %v1664 = vadd.f32 %v1531, %v1582
        %v1665 = vadd.f32 %v1532, %v1582
        %v1666 = vadd.f32 %v1533, %v1582
        %v1667 = vadd.f32 %v1534, %v1582
        %v1668 = vadd.f32 %v1535, %v1582
        %v1669 = vadd.f32 %v1536, %v1582
        %v1670 = vadd.f32 %v1537, %v1582
        %v1671 = vadd.f32 %v1538, %v1582
        %v1672 = vadd.f32 %v1539, %v1582
        %v1673 = vadd.f32 %v1540, %v1582
        %v1674 = vadd.f32 %v1541, %v1582
        %v1675 = vadd.f32 %v1542, %v1582
        %v1676 = vadd.f32 %v1543, %v1582
        %v1677 = vadd.f32 %v1544, %v1582
        %v1678 = vadd.f32 %v1545, %v1582
        %v1679 = vadd.f32 %v1546, %v1582
        %v1680 = vadd.f32 %v1547, %v1582
        %v1681 = vadd.f32 %v1548, %v1582
        %v1682 = vadd.f32 %v1549, %v1582
        %v1683 = vadd.f32 %v1550, %v1582
        %v1684 = vadd.f32 %v1551, %v1582
        %v1685 = vadd.f32 %v1552, %v1582
        %v1686 = vadd.f32 %v1553, %v1582
        %v1687 = vadd.f32 %v1554, %v1582
        %v1688 = vadd.f32 %v1555, %v1582
        %v1689 = vadd.f32 %v1556, %v1582
        %v1690 = vadd.f32 %v1557, %v1582
        %v1691 = vadd.f32 %v1558, %v1582
        %v1692 = vadd.f32 %v1559, %v1582
        %v1693 = vadd.f32 %v1560, %v1582
        %v1694 = vadd.f32 %v1561, %v1582
        %v1695 = vadd.f32 %v1562, %v1582
        %v1696 = vadd.f32 %v1563, %v1582
        %v1697 = vadd.f32 %v1564, %v1582
        %v1698 = vadd.f32 %v1565, %v1582
        %v1699 = vadd.f32 %v1566, %v1582
        %v1700 = vadd.f32 %v1567, %v1582
        %v1701 = vadd.f32 %v1568, %v1582
        %v1702 = vadd.f32 %v1569, %v1582
        %v1703 = vadd.f32 %v1570, %v1582
        %v1704 = vadd.f32 %v1571, %v1582
        %v1705 = vadd.f32 %v1572, %v1582
        %v1706 = vadd.f32 %v1573, %v1582
        %v1707 = vadd.f32 %v1574, %v1582
        %v1708 = vadd.f32 %v1575, %v1582
        %v1709 = vadd.f32 %v1576, %v1582
        %v1710 = vadd.f32 %v1577, %v1582
        %vm1711 = vcmp.ge.f32.partialorder %v1583, 0.0
        %vm1712 = vcmp.ge.f32.partialorder %v1584, 0.0
        %vm1713 = vcmp.ge.f32.partialorder %v1585, 0.0
        %vm1714 = vcmp.ge.f32.partialorder %v1586, 0.0
        %vm1715 = vcmp.ge.f32.partialorder %v1587, 0.0
        %vm1716 = vcmp.ge.f32.partialorder %v1588, 0.0
        %vm1717 = vcmp.ge.f32.partialorder %v1589, 0.0
        %vm1718 = vcmp.ge.f32.partialorder %v1590, 0.0
        %vm1719 = vcmp.ge.f32.partialorder %v1591, 0.0
        %vm1720 = vcmp.ge.f32.partialorder %v1592, 0.0
        %vm1721 = vcmp.ge.f32.partialorder %v1593, 0.0
        %vm1722 = vcmp.ge.f32.partialorder %v1594, 0.0
        %vm1723 = vcmp.ge.f32.partialorder %v1595, 0.0
        %vm1724 = vcmp.ge.f32.partialorder %v1596, 0.0
        %vm1725 = vcmp.ge.f32.partialorder %v1597, 0.0
        %vm1726 = vcmp.ge.f32.partialorder %v1598, 0.0
        %vm1727 = vcmp.ge.f32.partialorder %v1599, 0.0
        %vm1728 = vcmp.ge.f32.partialorder %v1600, 0.0
        %vm1729 = vcmp.ge.f32.partialorder %v1601, 0.0
        %vm1730 = vcmp.ge.f32.partialorder %v1602, 0.0
        %vm1731 = vcmp.ge.f32.partialorder %v1603, 0.0
        %vm1732 = vcmp.ge.f32.partialorder %v1604, 0.0
        %vm1733 = vcmp.ge.f32.partialorder %v1605, 0.0
        %vm1734 = vcmp.ge.f32.partialorder %v1606, 0.0
        %vm1735 = vcmp.ge.f32.partialorder %v1607, 0.0
        %vm1736 = vcmp.ge.f32.partialorder %v1608, 0.0
        %vm1737 = vcmp.ge.f32.partialorder %v1609, 0.0
        %vm1738 = vcmp.ge.f32.partialorder %v1610, 0.0
        %vm1739 = vcmp.ge.f32.partialorder %v1611, 0.0
        %vm1740 = vcmp.ge.f32.partialorder %v1612, 0.0
        %vm1741 = vcmp.ge.f32.partialorder %v1613, 0.0
        %vm1742 = vcmp.ge.f32.partialorder %v1614, 0.0
        %vm1743 = vcmp.ge.f32.partialorder %v1615, 0.0
        %vm1744 = vcmp.ge.f32.partialorder %v1616, 0.0
        %vm1745 = vcmp.ge.f32.partialorder %v1617, 0.0
        %vm1746 = vcmp.ge.f32.partialorder %v1618, 0.0
        %vm1747 = vcmp.ge.f32.partialorder %v1619, 0.0
        %vm1748 = vcmp.ge.f32.partialorder %v1620, 0.0
        %vm1749 = vcmp.ge.f32.partialorder %v1621, 0.0
        %vm1750 = vcmp.ge.f32.partialorder %v1622, 0.0
        %vm1751 = vcmp.ge.f32.partialorder %v1623, 0.0
        %vm1752 = vcmp.ge.f32.partialorder %v1624, 0.0
        %vm1753 = vcmp.ge.f32.partialorder %v1625, 0.0
        %vm1754 = vcmp.ge.f32.partialorder %v1626, 0.0
        %vm1755 = vcmp.ge.f32.partialorder %v1627, 0.0
        %vm1756 = vcmp.ge.f32.partialorder %v1628, 0.0
        %vm1757 = vcmp.ge.f32.partialorder %v1629, 0.0
        %vm1758 = vcmp.ge.f32.partialorder %v1630, 0.0
        %vm1759 = vcmp.ge.f32.partialorder %v1631, 0.0
        %vm1760 = vcmp.ge.f32.partialorder %v1632, 0.0
        %vm1761 = vcmp.ge.f32.partialorder %v1633, 0.0
        %vm1762 = vcmp.ge.f32.partialorder %v1634, 0.0
        %vm1763 = vcmp.ge.f32.partialorder %v1635, 0.0
        %vm1764 = vcmp.ge.f32.partialorder %v1636, 0.0
        %vm1765 = vcmp.ge.f32.partialorder %v1637, 0.0
        %vm1766 = vcmp.ge.f32.partialorder %v1638, 0.0
        %vm1767 = vcmp.ge.f32.partialorder %v1639, 0.0
        %vm1768 = vcmp.ge.f32.partialorder %v1640, 0.0
        %vm1769 = vcmp.ge.f32.partialorder %v1641, 0.0
        %vm1770 = vcmp.ge.f32.partialorder %v1642, 0.0
        %vm1771 = vcmp.ge.f32.partialorder %v1643, 0.0
        %vm1772 = vcmp.ge.f32.partialorder %v1644, 0.0
        %vm1773 = vcmp.ge.f32.partialorder %v1645, 0.0
        %vm1774 = vcmp.ge.f32.partialorder %v1646, 0.0
        %vm1775 = vcmp.ge.f32.partialorder %v1647, 0.0
        %vm1776 = vcmp.ge.f32.partialorder %v1648, 0.0
        %vm1777 = vcmp.ge.f32.partialorder %v1649, 0.0
        %vm1778 = vcmp.ge.f32.partialorder %v1650, 0.0
        %vm1779 = vcmp.ge.f32.partialorder %v1651, 0.0
        %vm1780 = vcmp.ge.f32.partialorder %v1652, 0.0
        %vm1781 = vcmp.ge.f32.partialorder %v1653, 0.0
        %vm1782 = vcmp.ge.f32.partialorder %v1654, 0.0
        %vm1783 = vcmp.ge.f32.partialorder %v1655, 0.0
        %vm1784 = vcmp.ge.f32.partialorder %v1656, 0.0
        %vm1785 = vcmp.ge.f32.partialorder %v1657, 0.0
        %vm1786 = vcmp.ge.f32.partialorder %v1658, 0.0
        %vm1787 = vcmp.ge.f32.partialorder %v1659, 0.0
        %vm1788 = vcmp.ge.f32.partialorder %v1660, 0.0
        %vm1789 = vcmp.ge.f32.partialorder %v1661, 0.0
        %vm1790 = vcmp.ge.f32.partialorder %v1662, 0.0
        %vm1791 = vcmp.ge.f32.partialorder %v1663, 0.0
        %vm1792 = vcmp.ge.f32.partialorder %v1664, 0.0
        %vm1793 = vcmp.ge.f32.partialorder %v1665, 0.0
        %vm1794 = vcmp.ge.f32.partialorder %v1666, 0.0
        %vm1795 = vcmp.ge.f32.partialorder %v1667, 0.0
        %vm1796 = vcmp.ge.f32.partialorder %v1668, 0.0
        %vm1797 = vcmp.ge.f32.partialorder %v1669, 0.0
        %vm1798 = vcmp.ge.f32.partialorder %v1670, 0.0
        %vm1799 = vcmp.ge.f32.partialorder %v1671, 0.0
        %vm1800 = vcmp.ge.f32.partialorder %v1672, 0.0
        %vm1801 = vcmp.ge.f32.partialorder %v1673, 0.0
        %vm1802 = vcmp.ge.f32.partialorder %v1674, 0.0
        %vm1803 = vcmp.ge.f32.partialorder %v1675, 0.0
        %vm1804 = vcmp.ge.f32.partialorder %v1676, 0.0
        %vm1805 = vcmp.ge.f32.partialorder %v1677, 0.0
        %vm1806 = vcmp.ge.f32.partialorder %v1678, 0.0
        %vm1807 = vcmp.ge.f32.partialorder %v1679, 0.0
        %vm1808 = vcmp.ge.f32.partialorder %v1680, 0.0
        %vm1809 = vcmp.ge.f32.partialorder %v1681, 0.0
        %vm1810 = vcmp.ge.f32.partialorder %v1682, 0.0
        %vm1811 = vcmp.ge.f32.partialorder %v1683, 0.0
        %vm1812 = vcmp.ge.f32.partialorder %v1684, 0.0
        %vm1813 = vcmp.ge.f32.partialorder %v1685, 0.0
        %vm1814 = vcmp.ge.f32.partialorder %v1686, 0.0
        %vm1815 = vcmp.ge.f32.partialorder %v1687, 0.0
        %vm1816 = vcmp.ge.f32.partialorder %v1688, 0.0
        %vm1817 = vcmp.ge.f32.partialorder %v1689, 0.0
        %vm1818 = vcmp.ge.f32.partialorder %v1690, 0.0
        %vm1819 = vcmp.ge.f32.partialorder %v1691, 0.0
        %vm1820 = vcmp.ge.f32.partialorder %v1692, 0.0
        %vm1821 = vcmp.ge.f32.partialorder %v1693, 0.0
        %vm1822 = vcmp.ge.f32.partialorder %v1694, 0.0
        %vm1823 = vcmp.ge.f32.partialorder %v1695, 0.0
        %vm1824 = vcmp.ge.f32.partialorder %v1696, 0.0
        %vm1825 = vcmp.ge.f32.partialorder %v1697, 0.0
        %vm1826 = vcmp.ge.f32.partialorder %v1698, 0.0
        %vm1827 = vcmp.ge.f32.partialorder %v1699, 0.0
        %vm1828 = vcmp.ge.f32.partialorder %v1700, 0.0
        %vm1829 = vcmp.ge.f32.partialorder %v1701, 0.0
        %vm1830 = vcmp.ge.f32.partialorder %v1702, 0.0
        %vm1831 = vcmp.ge.f32.partialorder %v1703, 0.0
        %vm1832 = vcmp.ge.f32.partialorder %v1704, 0.0
        %vm1833 = vcmp.ge.f32.partialorder %v1705, 0.0
        %vm1834 = vcmp.ge.f32.partialorder %v1706, 0.0
        %vm1835 = vcmp.ge.f32.partialorder %v1707, 0.0
        %vm1836 = vcmp.ge.f32.partialorder %v1708, 0.0
        %vm1837 = vcmp.ge.f32.partialorder %v1709, 0.0
        %vm1838 = vcmp.ge.f32.partialorder %v1710, 0.0
        %v1839 = vld [vmem:[#allocation4 + $0x2] sm:$0x1]
        %v1840 = vlaneseq
        %v1841 = vshrl.u32 %v1840, 7
        %v1842 = vsub.s32 0, %v1841
        %v1843 = vrot.slane %v1839, %v1842
        %v1844 = vmul.f32 %v1843, %v1583
        %v1845 = vmul.f32 %v1843, %v1584
        %v1846 = vmul.f32 %v1843, %v1585
        %v1847 = vmul.f32 %v1843, %v1586
        %v1848 = vmul.f32 %v1843, %v1587
        %v1849 = vmul.f32 %v1843, %v1588
        %v1850 = vmul.f32 %v1843, %v1589
        %v1851 = vmul.f32 %v1843, %v1590
        %v1852 = vmul.f32 %v1843, %v1591
        %v1853 = vmul.f32 %v1843, %v1592
        %v1854 = vmul.f32 %v1843, %v1593
        %v1855 = vmul.f32 %v1843, %v1594
        %v1856 = vmul.f32 %v1843, %v1595
        %v1857 = vmul.f32 %v1843, %v1596
        %v1858 = vmul.f32 %v1843, %v1597
        %v1859 = vmul.f32 %v1843, %v1598
        %v1860 = vmul.f32 %v1843, %v1599
        %v1861 = vmul.f32 %v1843, %v1600
        %v1862 = vmul.f32 %v1843, %v1601
        %v1863 = vmul.f32 %v1843, %v1602
        %v1864 = vmul.f32 %v1843, %v1603
        %v1865 = vmul.f32 %v1843, %v1604
        %v1866 = vmul.f32 %v1843, %v1605
        %v1867 = vmul.f32 %v1843, %v1606
        %v1868 = vmul.f32 %v1843, %v1607
        %v1869 = vmul.f32 %v1843, %v1608
        %v1870 = vmul.f32 %v1843, %v1609
        %v1871 = vmul.f32 %v1843, %v1610
        %v1872 = vmul.f32 %v1843, %v1611
        %v1873 = vmul.f32 %v1843, %v1612
        %v1874 = vmul.f32 %v1843, %v1613
        %v1875 = vmul.f32 %v1843, %v1614
        %v1876 = vmul.f32 %v1843, %v1615
        %v1877 = vmul.f32 %v1843, %v1616
        %v1878 = vmul.f32 %v1843, %v1617
        %v1879 = vmul.f32 %v1843, %v1618
        %v1880 = vmul.f32 %v1843, %v1619
        %v1881 = vmul.f32 %v1843, %v1620
        %v1882 = vmul.f32 %v1843, %v1621
        %v1883 = vmul.f32 %v1843, %v1622
        %v1884 = vmul.f32 %v1843, %v1623
        %v1885 = vmul.f32 %v1843, %v1624
        %v1886 = vmul.f32 %v1843, %v1625
        %v1887 = vmul.f32 %v1843, %v1626
        %v1888 = vmul.f32 %v1843, %v1627
        %v1889 = vmul.f32 %v1843, %v1628
        %v1890 = vmul.f32 %v1843, %v1629
        %v1891 = vmul.f32 %v1843, %v1630
        %v1892 = vmul.f32 %v1843, %v1631
        %v1893 = vmul.f32 %v1843, %v1632
        %v1894 = vmul.f32 %v1843, %v1633
        %v1895 = vmul.f32 %v1843, %v1634
        %v1896 = vmul.f32 %v1843, %v1635
        %v1897 = vmul.f32 %v1843, %v1636
        %v1898 = vmul.f32 %v1843, %v1637
        %v1899 = vmul.f32 %v1843, %v1638
        %v1900 = vmul.f32 %v1843, %v1639
        %v1901 = vmul.f32 %v1843, %v1640
        %v1902 = vmul.f32 %v1843, %v1641
        %v1903 = vmul.f32 %v1843, %v1642
        %v1904 = vmul.f32 %v1843, %v1643
        %v1905 = vmul.f32 %v1843, %v1644
        %v1906 = vmul.f32 %v1843, %v1645
        %v1907 = vmul.f32 %v1843, %v1646
        %v1908 = vmul.f32 %v1843, %v1647
        %v1909 = vmul.f32 %v1843, %v1648
        %v1910 = vmul.f32 %v1843, %v1649
        %v1911 = vmul.f32 %v1843, %v1650
        %v1912 = vmul.f32 %v1843, %v1651
        %v1913 = vmul.f32 %v1843, %v1652
        %v1914 = vmul.f32 %v1843, %v1653
        %v1915 = vmul.f32 %v1843, %v1654
        %v1916 = vmul.f32 %v1843, %v1655
        %v1917 = vmul.f32 %v1843, %v1656
        %v1918 = vmul.f32 %v1843, %v1657
        %v1919 = vmul.f32 %v1843, %v1658
        %v1920 = vmul.f32 %v1843, %v1659
        %v1921 = vmul.f32 %v1843, %v1660
        %v1922 = vmul.f32 %v1843, %v1661
        %v1923 = vmul.f32 %v1843, %v1662
        %v1924 = vmul.f32 %v1843, %v1663
        %v1925 = vmul.f32 %v1843, %v1664
        %v1926 = vmul.f32 %v1843, %v1665
        %v1927 = vmul.f32 %v1843, %v1666
        %v1928 = vmul.f32 %v1843, %v1667
        %v1929 = vmul.f32 %v1843, %v1668
        %v1930 = vmul.f32 %v1843, %v1669
        %v1931 = vmul.f32 %v1843, %v1670
        %v1932 = vmul.f32 %v1843, %v1671
        %v1933 = vmul.f32 %v1843, %v1672
        %v1934 = vmul.f32 %v1843, %v1673
        %v1935 = vmul.f32 %v1843, %v1674
        %v1936 = vmul.f32 %v1843, %v1675
        %v1937 = vmul.f32 %v1843, %v1676
        %v1938 = vmul.f32 %v1843, %v1677
        %v1939 = vmul.f32 %v1843, %v1678
        %v1940 = vmul.f32 %v1843, %v1679
        %v1941 = vmul.f32 %v1843, %v1680
        %v1942 = vmul.f32 %v1843, %v1681
        %v1943 = vmul.f32 %v1843, %v1682
        %v1944 = vmul.f32 %v1843, %v1683
        %v1945 = vmul.f32 %v1843, %v1684
        %v1946 = vmul.f32 %v1843, %v1685
        %v1947 = vmul.f32 %v1843, %v1686
        %v1948 = vmul.f32 %v1843, %v1687
        %v1949 = vmul.f32 %v1843, %v1688
        %v1950 = vmul.f32 %v1843, %v1689
        %v1951 = vmul.f32 %v1843, %v1690
        %v1952 = vmul.f32 %v1843, %v1691
        %v1953 = vmul.f32 %v1843, %v1692
        %v1954 = vmul.f32 %v1843, %v1693
        %v1955 = vmul.f32 %v1843, %v1694
        %v1956 = vmul.f32 %v1843, %v1695
        %v1957 = vmul.f32 %v1843, %v1696
        %v1958 = vmul.f32 %v1843, %v1697
        %v1959 = vmul.f32 %v1843, %v1698
        %v1960 = vmul.f32 %v1843, %v1699
        %v1961 = vmul.f32 %v1843, %v1700
        %v1962 = vmul.f32 %v1843, %v1701
        %v1963 = vmul.f32 %v1843, %v1702
        %v1964 = vmul.f32 %v1843, %v1703
        %v1965 = vmul.f32 %v1843, %v1704
        %v1966 = vmul.f32 %v1843, %v1705
        %v1967 = vmul.f32 %v1843, %v1706
        %v1968 = vmul.f32 %v1843, %v1707
        %v1969 = vmul.f32 %v1843, %v1708
        %v1970 = vmul.f32 %v1843, %v1709
        %v1971 = vmul.f32 %v1843, %v1710
        %v1972 = vsel %vm1711, %v1583, %v1844
        %v1973 = vsel %vm1712, %v1584, %v1845
        %v1974 = vsel %vm1713, %v1585, %v1846
        %v1975 = vsel %vm1714, %v1586, %v1847
        %v1976 = vsel %vm1715, %v1587, %v1848
        %v1977 = vsel %vm1716, %v1588, %v1849
        %v1978 = vsel %vm1717, %v1589, %v1850
        %v1979 = vsel %vm1718, %v1590, %v1851
        %v1980 = vsel %vm1719, %v1591, %v1852
        %v1981 = vsel %vm1720, %v1592, %v1853
        %v1982 = vsel %vm1721, %v1593, %v1854
        %v1983 = vsel %vm1722, %v1594, %v1855
        %v1984 = vsel %vm1723, %v1595, %v1856
        %v1985 = vsel %vm1724, %v1596, %v1857
        %v1986 = vsel %vm1725, %v1597, %v1858
        %v1987 = vsel %vm1726, %v1598, %v1859
        %v1988 = vsel %vm1727, %v1599, %v1860
        %v1989 = vsel %vm1728, %v1600, %v1861
        %v1990 = vsel %vm1729, %v1601, %v1862
        %v1991 = vsel %vm1730, %v1602, %v1863
        %v1992 = vsel %vm1731, %v1603, %v1864
        %v1993 = vsel %vm1732, %v1604, %v1865
        %v1994 = vsel %vm1733, %v1605, %v1866
        %v1995 = vsel %vm1734, %v1606, %v1867
        %v1996 = vsel %vm1735, %v1607, %v1868
        %v1997 = vsel %vm1736, %v1608, %v1869
        %v1998 = vsel %vm1737, %v1609, %v1870
        %v1999 = vsel %vm1738, %v1610, %v1871
        %v2000 = vsel %vm1739, %v1611, %v1872
        %v2001 = vsel %vm1740, %v1612, %v1873
        %v2002 = vsel %vm1741, %v1613, %v1874
        %v2003 = vsel %vm1742, %v1614, %v1875
        %v2004 = vsel %vm1743, %v1615, %v1876
        %v2005 = vsel %vm1744, %v1616, %v1877
        %v2006 = vsel %vm1745, %v1617, %v1878
        %v2007 = vsel %vm1746, %v1618, %v1879
        %v2008 = vsel %vm1747, %v1619, %v1880
        %v2009 = vsel %vm1748, %v1620, %v1881
        %v2010 = vsel %vm1749, %v1621, %v1882
        %v2011 = vsel %vm1750, %v1622, %v1883
        %v2012 = vsel %vm1751, %v1623, %v1884
        %v2013 = vsel %vm1752, %v1624, %v1885
        %v2014 = vsel %vm1753, %v1625, %v1886
        %v2015 = vsel %vm1754, %v1626, %v1887
        %v2016 = vsel %vm1755, %v1627, %v1888
        %v2017 = vsel %vm1756, %v1628, %v1889
        %v2018 = vsel %vm1757, %v1629, %v1890
        %v2019 = vsel %vm1758, %v1630, %v1891
        %v2020 = vsel %vm1759, %v1631, %v1892
        %v2021 = vsel %vm1760, %v1632, %v1893
        %v2022 = vsel %vm1761, %v1633, %v1894
        %v2023 = vsel %vm1762, %v1634, %v1895
        %v2024 = vsel %vm1763, %v1635, %v1896
        %v2025 = vsel %vm1764, %v1636, %v1897
        %v2026 = vsel %vm1765, %v1637, %v1898
        %v2027 = vsel %vm1766, %v1638, %v1899
        %v2028 = vsel %vm1767, %v1639, %v1900
        %v2029 = vsel %vm1768, %v1640, %v1901
        %v2030 = vsel %vm1769, %v1641, %v1902
        %v2031 = vsel %vm1770, %v1642, %v1903
        %v2032 = vsel %vm1771, %v1643, %v1904
        %v2033 = vsel %vm1772, %v1644, %v1905
        %v2034 = vsel %vm1773, %v1645, %v1906
        %v2035 = vsel %vm1774, %v1646, %v1907
        %v2036 = vsel %vm1775, %v1647, %v1908
        %v2037 = vsel %vm1776, %v1648, %v1909
        %v2038 = vsel %vm1777, %v1649, %v1910
        %v2039 = vsel %vm1778, %v1650, %v1911
        %v2040 = vsel %vm1779, %v1651, %v1912
        %v2041 = vsel %vm1780, %v1652, %v1913
        %v2042 = vsel %vm1781, %v1653, %v1914
        %v2043 = vsel %vm1782, %v1654, %v1915
        %v2044 = vsel %vm1783, %v1655, %v1916
        %v2045 = vsel %vm1784, %v1656, %v1917
        %v2046 = vsel %vm1785, %v1657, %v1918
        %v2047 = vsel %vm1786, %v1658, %v1919
        %v2048 = vsel %vm1787, %v1659, %v1920
        %v2049 = vsel %vm1788, %v1660, %v1921
        %v2050 = vsel %vm1789, %v1661, %v1922
        %v2051 = vsel %vm1790, %v1662, %v1923
        %v2052 = vsel %vm1791, %v1663, %v1924
        %v2053 = vsel %vm1792, %v1664, %v1925
        %v2054 = vsel %vm1793, %v1665, %v1926
        %v2055 = vsel %vm1794, %v1666, %v1927
        %v2056 = vsel %vm1795, %v1667, %v1928
        %v2057 = vsel %vm1796, %v1668, %v1929
        %v2058 = vsel %vm1797, %v1669, %v1930
        %v2059 = vsel %vm1798, %v1670, %v1931
        %v2060 = vsel %vm1799, %v1671, %v1932
        %v2061 = vsel %vm1800, %v1672, %v1933
        %v2062 = vsel %vm1801, %v1673, %v1934
        %v2063 = vsel %vm1802, %v1674, %v1935
        %v2064 = vsel %vm1803, %v1675, %v1936
        %v2065 = vsel %vm1804, %v1676, %v1937
        %v2066 = vsel %vm1805, %v1677, %v1938
        %v2067 = vsel %vm1806, %v1678, %v1939
        %v2068 = vsel %vm1807, %v1679, %v1940
        %v2069 = vsel %vm1808, %v1680, %v1941
        %v2070 = vsel %vm1809, %v1681, %v1942
        %v2071 = vsel %vm1810, %v1682, %v1943
        %v2072 = vsel %vm1811, %v1683, %v1944
        %v2073 = vsel %vm1812, %v1684, %v1945
        %v2074 = vsel %vm1813, %v1685, %v1946
        %v2075 = vsel %vm1814, %v1686, %v1947
        %v2076 = vsel %vm1815, %v1687, %v1948
        %v2077 = vsel %vm1816, %v1688, %v1949
        %v2078 = vsel %vm1817, %v1689, %v1950
        %v2079 = vsel %vm1818, %v1690, %v1951
        %v2080 = vsel %vm1819, %v1691, %v1952
        %v2081 = vsel %vm1820, %v1692, %v1953
        %v2082 = vsel %vm1821, %v1693, %v1954
        %v2083 = vsel %vm1822, %v1694, %v1955
        %v2084 = vsel %vm1823, %v1695, %v1956
        %v2085 = vsel %vm1824, %v1696, %v1957
        %v2086 = vsel %vm1825, %v1697, %v1958
        %v2087 = vsel %vm1826, %v1698, %v1959
        %v2088 = vsel %vm1827, %v1699, %v1960
        %v2089 = vsel %vm1828, %v1700, %v1961
        %v2090 = vsel %vm1829, %v1701, %v1962
        %v2091 = vsel %vm1830, %v1702, %v1963
        %v2092 = vsel %vm1831, %v1703, %v1964
        %v2093 = vsel %vm1832, %v1704, %v1965
        %v2094 = vsel %vm1833, %v1705, %v1966
        %v2095 = vsel %vm1834, %v1706, %v1967
        %v2096 = vsel %vm1835, %v1707, %v1968
        %v2097 = vsel %vm1836, %v1708, %v1969
        %v2098 = vsel %vm1837, %v1709, %v1970
        %v2099 = vsel %vm1838, %v1710, %v1971
        %v2100 = vpack.c.bf16 %v1973, %v1972
        %v2101 = vpack.c.bf16 %v1975, %v1974
        %v2102 = vpack.c.bf16 %v1977, %v1976
        %v2103 = vpack.c.bf16 %v1979, %v1978
        %v2104 = vpack.c.bf16 %v1981, %v1980
        %v2105 = vpack.c.bf16 %v1983, %v1982
        %v2106 = vpack.c.bf16 %v1985, %v1984
        %v2107 = vpack.c.bf16 %v1987, %v1986
        %v2108 = vpack.c.bf16 %v1989, %v1988
        %v2109 = vpack.c.bf16 %v1991, %v1990
        %v2110 = vpack.c.bf16 %v1993, %v1992
        %v2111 = vpack.c.bf16 %v1995, %v1994
        %v2112 = vpack.c.bf16 %v1997, %v1996
        %v2113 = vpack.c.bf16 %v1999, %v1998
        %v2114 = vpack.c.bf16 %v2001, %v2000
        %v2115 = vpack.c.bf16 %v2003, %v2002
        %v2116 = vpack.c.bf16 %v2005, %v2004
        %v2117 = vpack.c.bf16 %v2007, %v2006
        %v2118 = vpack.c.bf16 %v2009, %v2008
        %v2119 = vpack.c.bf16 %v2011, %v2010
        %v2120 = vpack.c.bf16 %v2013, %v2012
        %v2121 = vpack.c.bf16 %v2015, %v2014
        %v2122 = vpack.c.bf16 %v2017, %v2016
        %v2123 = vpack.c.bf16 %v2019, %v2018
        %v2124 = vpack.c.bf16 %v2021, %v2020
        %v2125 = vpack.c.bf16 %v2023, %v2022
        %v2126 = vpack.c.bf16 %v2025, %v2024
        %v2127 = vpack.c.bf16 %v2027, %v2026
        %v2128 = vpack.c.bf16 %v2029, %v2028
        %v2129 = vpack.c.bf16 %v2031, %v2030
        %v2130 = vpack.c.bf16 %v2033, %v2032
        %v2131 = vpack.c.bf16 %v2035, %v2034
        %v2132 = vpack.c.bf16 %v2037, %v2036
        %v2133 = vpack.c.bf16 %v2039, %v2038
        %v2134 = vpack.c.bf16 %v2041, %v2040
        %v2135 = vpack.c.bf16 %v2043, %v2042
        %v2136 = vpack.c.bf16 %v2045, %v2044
        %v2137 = vpack.c.bf16 %v2047, %v2046
        %v2138 = vpack.c.bf16 %v2049, %v2048
        %v2139 = vpack.c.bf16 %v2051, %v2050
        %v2140 = vpack.c.bf16 %v2053, %v2052
        %v2141 = vpack.c.bf16 %v2055, %v2054
        %v2142 = vpack.c.bf16 %v2057, %v2056
        %v2143 = vpack.c.bf16 %v2059, %v2058
        %v2144 = vpack.c.bf16 %v2061, %v2060
        %v2145 = vpack.c.bf16 %v2063, %v2062
        %v2146 = vpack.c.bf16 %v2065, %v2064
        %v2147 = vpack.c.bf16 %v2067, %v2066
        %v2148 = vpack.c.bf16 %v2069, %v2068
        %v2149 = vpack.c.bf16 %v2071, %v2070
        %v2150 = vpack.c.bf16 %v2073, %v2072
        %v2151 = vpack.c.bf16 %v2075, %v2074
        %v2152 = vpack.c.bf16 %v2077, %v2076
        %v2153 = vpack.c.bf16 %v2079, %v2078
        %v2154 = vpack.c.bf16 %v2081, %v2080
        %v2155 = vpack.c.bf16 %v2083, %v2082
        %v2156 = vpack.c.bf16 %v2085, %v2084
        %v2157 = vpack.c.bf16 %v2087, %v2086
        %v2158 = vpack.c.bf16 %v2089, %v2088
        %v2159 = vpack.c.bf16 %v2091, %v2090
        %v2160 = vpack.c.bf16 %v2093, %v2092
        %v2161 = vpack.c.bf16 %v2095, %v2094
        %v2162 = vpack.c.bf16 %v2097, %v2096
        %v2163 = vpack.c.bf16 %v2099, %v2098
        %v2228 = vunpack.c.l.b16 %v2100
        %v2229 = vunpack.c.h.b16 %v2100
        %v2230 = vunpack.c.l.b16 %v2101
        %v2231 = vunpack.c.h.b16 %v2101
        %v2232 = vunpack.c.l.b16 %v2102
        %v2233 = vunpack.c.h.b16 %v2102
        %v2234 = vunpack.c.l.b16 %v2103
        %v2235 = vunpack.c.h.b16 %v2103
        %v2236 = vunpack.c.l.b16 %v2104
        %v2237 = vunpack.c.h.b16 %v2104
        %v2238 = vunpack.c.l.b16 %v2105
        %v2239 = vunpack.c.h.b16 %v2105
        %v2240 = vunpack.c.l.b16 %v2106
        %v2241 = vunpack.c.h.b16 %v2106
        %v2242 = vunpack.c.l.b16 %v2107
        %v2243 = vunpack.c.h.b16 %v2107
        %v2244 = vunpack.c.l.b16 %v2108
        %v2245 = vunpack.c.h.b16 %v2108
        %v2246 = vunpack.c.l.b16 %v2109
        %v2247 = vunpack.c.h.b16 %v2109
        %v2248 = vunpack.c.l.b16 %v2110
        %v2249 = vunpack.c.h.b16 %v2110
        %v2250 = vunpack.c.l.b16 %v2111
        %v2251 = vunpack.c.h.b16 %v2111
        %v2252 = vunpack.c.l.b16 %v2112
        %v2253 = vunpack.c.h.b16 %v2112
        %v2254 = vunpack.c.l.b16 %v2113
        %v2255 = vunpack.c.h.b16 %v2113
        %v2256 = vunpack.c.l.b16 %v2114
        %v2257 = vunpack.c.h.b16 %v2114
        %v2258 = vunpack.c.l.b16 %v2115
        %v2259 = vunpack.c.h.b16 %v2115
        %v2260 = vunpack.c.l.b16 %v2116
        %v2261 = vunpack.c.h.b16 %v2116
        %v2262 = vunpack.c.l.b16 %v2117
        %v2263 = vunpack.c.h.b16 %v2117
        %v2264 = vunpack.c.l.b16 %v2118
        %v2265 = vunpack.c.h.b16 %v2118
        %v2266 = vunpack.c.l.b16 %v2119
        %v2267 = vunpack.c.h.b16 %v2119
        %v2268 = vunpack.c.l.b16 %v2120
        %v2269 = vunpack.c.h.b16 %v2120
        %v2270 = vunpack.c.l.b16 %v2121
        %v2271 = vunpack.c.h.b16 %v2121
        %v2272 = vunpack.c.l.b16 %v2122
        %v2273 = vunpack.c.h.b16 %v2122
        %v2274 = vunpack.c.l.b16 %v2123
        %v2275 = vunpack.c.h.b16 %v2123
        %v2276 = vunpack.c.l.b16 %v2124
        %v2277 = vunpack.c.h.b16 %v2124
        %v2278 = vunpack.c.l.b16 %v2125
        %v2279 = vunpack.c.h.b16 %v2125
        %v2280 = vunpack.c.l.b16 %v2126
        %v2281 = vunpack.c.h.b16 %v2126
        %v2282 = vunpack.c.l.b16 %v2127
        %v2283 = vunpack.c.h.b16 %v2127
        %v2284 = vunpack.c.l.b16 %v2128
        %v2285 = vunpack.c.h.b16 %v2128
        %v2286 = vunpack.c.l.b16 %v2129
        %v2287 = vunpack.c.h.b16 %v2129
        %v2288 = vunpack.c.l.b16 %v2130
        %v2289 = vunpack.c.h.b16 %v2130
        %v2290 = vunpack.c.l.b16 %v2131
        %v2291 = vunpack.c.h.b16 %v2131
        %v2292 = vunpack.c.l.b16 %v2132
        %v2293 = vunpack.c.h.b16 %v2132
        %v2294 = vunpack.c.l.b16 %v2133
        %v2295 = vunpack.c.h.b16 %v2133
        %v2296 = vunpack.c.l.b16 %v2134
        %v2297 = vunpack.c.h.b16 %v2134
        %v2298 = vunpack.c.l.b16 %v2135
        %v2299 = vunpack.c.h.b16 %v2135
        %v2300 = vunpack.c.l.b16 %v2136
        %v2301 = vunpack.c.h.b16 %v2136
        %v2302 = vunpack.c.l.b16 %v2137
        %v2303 = vunpack.c.h.b16 %v2137
        %v2304 = vunpack.c.l.b16 %v2138
        %v2305 = vunpack.c.h.b16 %v2138
        %v2306 = vunpack.c.l.b16 %v2139
        %v2307 = vunpack.c.h.b16 %v2139
        %v2308 = vunpack.c.l.b16 %v2140
        %v2309 = vunpack.c.h.b16 %v2140
        %v2310 = vunpack.c.l.b16 %v2141
        %v2311 = vunpack.c.h.b16 %v2141
        %v2312 = vunpack.c.l.b16 %v2142
        %v2313 = vunpack.c.h.b16 %v2142
        %v2314 = vunpack.c.l.b16 %v2143
        %v2315 = vunpack.c.h.b16 %v2143
        %v2316 = vunpack.c.l.b16 %v2144
        %v2317 = vunpack.c.h.b16 %v2144
        %v2318 = vunpack.c.l.b16 %v2145
        %v2319 = vunpack.c.h.b16 %v2145
        %v2320 = vunpack.c.l.b16 %v2146
        %v2321 = vunpack.c.h.b16 %v2146
        %v2322 = vunpack.c.l.b16 %v2147
        %v2323 = vunpack.c.h.b16 %v2147
        %v2324 = vunpack.c.l.b16 %v2148
        %v2325 = vunpack.c.h.b16 %v2148
        %v2326 = vunpack.c.l.b16 %v2149
        %v2327 = vunpack.c.h.b16 %v2149
        %v2328 = vunpack.c.l.b16 %v2150
        %v2329 = vunpack.c.h.b16 %v2150
        %v2330 = vunpack.c.l.b16 %v2151
        %v2331 = vunpack.c.h.b16 %v2151
        %v2332 = vunpack.c.l.b16 %v2152
        %v2333 = vunpack.c.h.b16 %v2152
        %v2334 = vunpack.c.l.b16 %v2153
        %v2335 = vunpack.c.h.b16 %v2153
        %v2336 = vunpack.c.l.b16 %v2154
        %v2337 = vunpack.c.h.b16 %v2154
        %v2338 = vunpack.c.l.b16 %v2155
        %v2339 = vunpack.c.h.b16 %v2155
        %v2340 = vunpack.c.l.b16 %v2156
        %v2341 = vunpack.c.h.b16 %v2156
        %v2342 = vunpack.c.l.b16 %v2157
        %v2343 = vunpack.c.h.b16 %v2157
        %v2344 = vunpack.c.l.b16 %v2158
        %v2345 = vunpack.c.h.b16 %v2158
        %v2346 = vunpack.c.l.b16 %v2159
        %v2347 = vunpack.c.h.b16 %v2159
        %v2348 = vunpack.c.l.b16 %v2160
        %v2349 = vunpack.c.h.b16 %v2160
        %v2350 = vunpack.c.l.b16 %v2161
        %v2351 = vunpack.c.h.b16 %v2161
        %v2352 = vunpack.c.l.b16 %v2162
        %v2353 = vunpack.c.h.b16 %v2162
        %v2354 = vunpack.c.l.b16 %v2163
        %v2355 = vunpack.c.h.b16 %v2163
        %v2356 = vpack.c.b16 %v2228, %v2228
        %v2357 = vpack.c.b16 %v2229, %v2229
        %v2358 = vpack.c.b16 %v2230, %v2230
        %v2359 = vpack.c.b16 %v2231, %v2231
        %v2360 = vpack.c.b16 %v2232, %v2232
        %v2361 = vpack.c.b16 %v2233, %v2233
        %v2362 = vpack.c.b16 %v2234, %v2234
        %v2363 = vpack.c.b16 %v2235, %v2235
        %v2364 = vpack.c.b16 %v2236, %v2236
        %v2365 = vpack.c.b16 %v2237, %v2237
        %v2366 = vpack.c.b16 %v2238, %v2238
        %v2367 = vpack.c.b16 %v2239, %v2239
        %v2368 = vpack.c.b16 %v2240, %v2240
        %v2369 = vpack.c.b16 %v2241, %v2241
        %v2370 = vpack.c.b16 %v2242, %v2242
        %v2371 = vpack.c.b16 %v2243, %v2243
        %v2372 = vpack.c.b16 %v2244, %v2244
        %v2373 = vpack.c.b16 %v2245, %v2245
        %v2374 = vpack.c.b16 %v2246, %v2246
        %v2375 = vpack.c.b16 %v2247, %v2247
        %v2376 = vpack.c.b16 %v2248, %v2248
        %v2377 = vpack.c.b16 %v2249, %v2249
        %v2378 = vpack.c.b16 %v2250, %v2250
        %v2379 = vpack.c.b16 %v2251, %v2251
        %v2380 = vpack.c.b16 %v2252, %v2252
        %v2381 = vpack.c.b16 %v2253, %v2253
        %v2382 = vpack.c.b16 %v2254, %v2254
        %v2383 = vpack.c.b16 %v2255, %v2255
        %v2384 = vpack.c.b16 %v2256, %v2256
        %v2385 = vpack.c.b16 %v2257, %v2257
        %v2386 = vpack.c.b16 %v2258, %v2258
        %v2387 = vpack.c.b16 %v2259, %v2259
        %v2388 = vpack.c.b16 %v2260, %v2260
        %v2389 = vpack.c.b16 %v2261, %v2261
        %v2390 = vpack.c.b16 %v2262, %v2262
        %v2391 = vpack.c.b16 %v2263, %v2263
        %v2392 = vpack.c.b16 %v2264, %v2264
        %v2393 = vpack.c.b16 %v2265, %v2265
        %v2394 = vpack.c.b16 %v2266, %v2266
        %v2395 = vpack.c.b16 %v2267, %v2267
        %v2396 = vpack.c.b16 %v2268, %v2268
        %v2397 = vpack.c.b16 %v2269, %v2269
        %v2398 = vpack.c.b16 %v2270, %v2270
        %v2399 = vpack.c.b16 %v2271, %v2271
        %v2400 = vpack.c.b16 %v2272, %v2272
        %v2401 = vpack.c.b16 %v2273, %v2273
        %v2402 = vpack.c.b16 %v2274, %v2274
        %v2403 = vpack.c.b16 %v2275, %v2275
        %v2404 = vpack.c.b16 %v2276, %v2276
        %v2405 = vpack.c.b16 %v2277, %v2277
        %v2406 = vpack.c.b16 %v2278, %v2278
        %v2407 = vpack.c.b16 %v2279, %v2279
        %v2408 = vpack.c.b16 %v2280, %v2280
        %v2409 = vpack.c.b16 %v2281, %v2281
        %v2410 = vpack.c.b16 %v2282, %v2282
        %v2411 = vpack.c.b16 %v2283, %v2283
        %v2412 = vpack.c.b16 %v2284, %v2284
        %v2413 = vpack.c.b16 %v2285, %v2285
        %v2414 = vpack.c.b16 %v2286, %v2286
        %v2415 = vpack.c.b16 %v2287, %v2287
        %v2416 = vpack.c.b16 %v2288, %v2288
        %v2417 = vpack.c.b16 %v2289, %v2289
        %v2418 = vpack.c.b16 %v2290, %v2290
        %v2419 = vpack.c.b16 %v2291, %v2291
        %v2420 = vpack.c.b16 %v2292, %v2292
        %v2421 = vpack.c.b16 %v2293, %v2293
        %v2422 = vpack.c.b16 %v2294, %v2294
        %v2423 = vpack.c.b16 %v2295, %v2295
        %v2424 = vpack.c.b16 %v2296, %v2296
        %v2425 = vpack.c.b16 %v2297, %v2297
        %v2426 = vpack.c.b16 %v2298, %v2298
        %v2427 = vpack.c.b16 %v2299, %v2299
        %v2428 = vpack.c.b16 %v2300, %v2300
        %v2429 = vpack.c.b16 %v2301, %v2301
        %v2430 = vpack.c.b16 %v2302, %v2302
        %v2431 = vpack.c.b16 %v2303, %v2303
        %v2432 = vpack.c.b16 %v2304, %v2304
        %v2433 = vpack.c.b16 %v2305, %v2305
        %v2434 = vpack.c.b16 %v2306, %v2306
        %v2435 = vpack.c.b16 %v2307, %v2307
        %v2436 = vpack.c.b16 %v2308, %v2308
        %v2437 = vpack.c.b16 %v2309, %v2309
        %v2438 = vpack.c.b16 %v2310, %v2310
        %v2439 = vpack.c.b16 %v2311, %v2311
        %v2440 = vpack.c.b16 %v2312, %v2312
        %v2441 = vpack.c.b16 %v2313, %v2313
        %v2442 = vpack.c.b16 %v2314, %v2314
        %v2443 = vpack.c.b16 %v2315, %v2315
        %v2444 = vpack.c.b16 %v2316, %v2316
        %v2445 = vpack.c.b16 %v2317, %v2317
        %v2446 = vpack.c.b16 %v2318, %v2318
        %v2447 = vpack.c.b16 %v2319, %v2319
        %v2448 = vpack.c.b16 %v2320, %v2320
        %v2449 = vpack.c.b16 %v2321, %v2321
        %v2450 = vpack.c.b16 %v2322, %v2322
        %v2451 = vpack.c.b16 %v2323, %v2323
        %v2452 = vpack.c.b16 %v2324, %v2324
        %v2453 = vpack.c.b16 %v2325, %v2325
        %v2454 = vpack.c.b16 %v2326, %v2326
        %v2455 = vpack.c.b16 %v2327, %v2327
        %v2456 = vpack.c.b16 %v2328, %v2328
        %v2457 = vpack.c.b16 %v2329, %v2329
        %v2458 = vpack.c.b16 %v2330, %v2330
        %v2459 = vpack.c.b16 %v2331, %v2331
        %v2460 = vpack.c.b16 %v2332, %v2332
        %v2461 = vpack.c.b16 %v2333, %v2333
        %v2462 = vpack.c.b16 %v2334, %v2334
        %v2463 = vpack.c.b16 %v2335, %v2335
        %v2464 = vpack.c.b16 %v2336, %v2336
        %v2465 = vpack.c.b16 %v2337, %v2337
        %v2466 = vpack.c.b16 %v2338, %v2338
        %v2467 = vpack.c.b16 %v2339, %v2339
        %v2468 = vpack.c.b16 %v2340, %v2340
        %v2469 = vpack.c.b16 %v2341, %v2341
        %v2470 = vpack.c.b16 %v2342, %v2342
        %v2471 = vpack.c.b16 %v2343, %v2343
        %v2472 = vpack.c.b16 %v2344, %v2344
        %v2473 = vpack.c.b16 %v2345, %v2345
        %v2474 = vpack.c.b16 %v2346, %v2346
        %v2475 = vpack.c.b16 %v2347, %v2347
        %v2476 = vpack.c.b16 %v2348, %v2348
        %v2477 = vpack.c.b16 %v2349, %v2349
        %v2478 = vpack.c.b16 %v2350, %v2350
        %v2479 = vpack.c.b16 %v2351, %v2351
        %v2480 = vpack.c.b16 %v2352, %v2352
        %v2481 = vpack.c.b16 %v2353, %v2353
        %v2482 = vpack.c.b16 %v2354, %v2354
        %v2483 = vpack.c.b16 %v2355, %v2355
        %vm2612 = vcmask 519168
        %2613 = vst.msk [vmem:[%s234] sm:$0xf] %vm2612, %v2356
        %2614 = vst.msk [vmem:[%s234 + $0x4] sm:$0xf] %vm2612, %v2357
        %2615 = vst.msk [vmem:[%s234 + $0x8] sm:$0xf] %vm2612, %v2358
        %2616 = vst.msk [vmem:[%s234 + $0xc] sm:$0xf] %vm2612, %v2359
        %2617 = vst.msk [vmem:[%s234 + $0x10] sm:$0xf] %vm2612, %v2360
        %2618 = vst.msk [vmem:[%s234 + $0x14] sm:$0xf] %vm2612, %v2361
        %2619 = vst.msk [vmem:[%s234 + $0x18] sm:$0xf] %vm2612, %v2362
        %2620 = vst.msk [vmem:[%s234 + $0x1c] sm:$0xf] %vm2612, %v2363
        %2621 = vst.msk [vmem:[%s234 + $0x20] sm:$0xf] %vm2612, %v2364
        %2622 = vst.msk [vmem:[%s234 + $0x24] sm:$0xf] %vm2612, %v2365
        %2623 = vst.msk [vmem:[%s234 + $0x28] sm:$0xf] %vm2612, %v2366
        %2624 = vst.msk [vmem:[%s234 + $0x2c] sm:$0xf] %vm2612, %v2367
        %2625 = vst.msk [vmem:[%s234 + $0x30] sm:$0xf] %vm2612, %v2368
        %2626 = vst.msk [vmem:[%s234 + $0x34] sm:$0xf] %vm2612, %v2369
        %2627 = vst.msk [vmem:[%s234 + $0x38] sm:$0xf] %vm2612, %v2370
        %2628 = vst.msk [vmem:[%s234 + $0x3c] sm:$0xf] %vm2612, %v2371
        %2629 = vst.msk [vmem:[%s234 + $0x40] sm:$0xf] %vm2612, %v2372
        %2630 = vst.msk [vmem:[%s234 + $0x44] sm:$0xf] %vm2612, %v2373
        %2631 = vst.msk [vmem:[%s234 + $0x48] sm:$0xf] %vm2612, %v2374
        %2632 = vst.msk [vmem:[%s234 + $0x4c] sm:$0xf] %vm2612, %v2375
        %2633 = vst.msk [vmem:[%s234 + $0x50] sm:$0xf] %vm2612, %v2376
        %2634 = vst.msk [vmem:[%s234 + $0x54] sm:$0xf] %vm2612, %v2377
        %2635 = vst.msk [vmem:[%s234 + $0x58] sm:$0xf] %vm2612, %v2378
        %2636 = vst.msk [vmem:[%s234 + $0x5c] sm:$0xf] %vm2612, %v2379
        %2637 = vst.msk [vmem:[%s234 + $0x60] sm:$0xf] %vm2612, %v2380
        %2638 = vst.msk [vmem:[%s234 + $0x64] sm:$0xf] %vm2612, %v2381
        %2639 = vst.msk [vmem:[%s234 + $0x68] sm:$0xf] %vm2612, %v2382
        %2640 = vst.msk [vmem:[%s234 + $0x6c] sm:$0xf] %vm2612, %v2383
        %2641 = vst.msk [vmem:[%s234 + $0x70] sm:$0xf] %vm2612, %v2384
        %2642 = vst.msk [vmem:[%s234 + $0x74] sm:$0xf] %vm2612, %v2385
        %2643 = vst.msk [vmem:[%s234 + $0x78] sm:$0xf] %vm2612, %v2386
        %2644 = vst.msk [vmem:[%s234 + $0x7c] sm:$0xf] %vm2612, %v2387
        %2645 = vst.msk [vmem:[%s234 + $0x80] sm:$0xf] %vm2612, %v2388
        %2646 = vst.msk [vmem:[%s234 + $0x84] sm:$0xf] %vm2612, %v2389
        %2647 = vst.msk [vmem:[%s234 + $0x88] sm:$0xf] %vm2612, %v2390
        %2648 = vst.msk [vmem:[%s234 + $0x8c] sm:$0xf] %vm2612, %v2391
        %2649 = vst.msk [vmem:[%s234 + $0x90] sm:$0xf] %vm2612, %v2392
        %2650 = vst.msk [vmem:[%s234 + $0x94] sm:$0xf] %vm2612, %v2393
        %2651 = vst.msk [vmem:[%s234 + $0x98] sm:$0xf] %vm2612, %v2394
        %2652 = vst.msk [vmem:[%s234 + $0x9c] sm:$0xf] %vm2612, %v2395
        %2653 = vst.msk [vmem:[%s234 + $0xa0] sm:$0xf] %vm2612, %v2396
        %2654 = vst.msk [vmem:[%s234 + $0xa4] sm:$0xf] %vm2612, %v2397
        %2655 = vst.msk [vmem:[%s234 + $0xa8] sm:$0xf] %vm2612, %v2398
        %2656 = vst.msk [vmem:[%s234 + $0xac] sm:$0xf] %vm2612, %v2399
        %2657 = vst.msk [vmem:[%s234 + $0xb0] sm:$0xf] %vm2612, %v2400
        %2658 = vst.msk [vmem:[%s234 + $0xb4] sm:$0xf] %vm2612, %v2401
        %2659 = vst.msk [vmem:[%s234 + $0xb8] sm:$0xf] %vm2612, %v2402
        %2660 = vst.msk [vmem:[%s234 + $0xbc] sm:$0xf] %vm2612, %v2403
        %2661 = vst.msk [vmem:[%s234 + $0xc0] sm:$0xf] %vm2612, %v2404
        %2662 = vst.msk [vmem:[%s234 + $0xc4] sm:$0xf] %vm2612, %v2405
        %2663 = vst.msk [vmem:[%s234 + $0xc8] sm:$0xf] %vm2612, %v2406
        %2664 = vst.msk [vmem:[%s234 + $0xcc] sm:$0xf] %vm2612, %v2407
        %2665 = vst.msk [vmem:[%s234 + $0xd0] sm:$0xf] %vm2612, %v2408
        %2666 = vst.msk [vmem:[%s234 + $0xd4] sm:$0xf] %vm2612, %v2409
        %2667 = vst.msk [vmem:[%s234 + $0xd8] sm:$0xf] %vm2612, %v2410
        %2668 = vst.msk [vmem:[%s234 + $0xdc] sm:$0xf] %vm2612, %v2411
        %2669 = vst.msk [vmem:[%s234 + $0xe0] sm:$0xf] %vm2612, %v2412
        %2670 = vst.msk [vmem:[%s234 + $0xe4] sm:$0xf] %vm2612, %v2413
        %2671 = vst.msk [vmem:[%s234 + $0xe8] sm:$0xf] %vm2612, %v2414
        %2672 = vst.msk [vmem:[%s234 + $0xec] sm:$0xf] %vm2612, %v2415
        %2673 = vst.msk [vmem:[%s234 + $0xf0] sm:$0xf] %vm2612, %v2416
        %2674 = vst.msk [vmem:[%s234 + $0xf4] sm:$0xf] %vm2612, %v2417
        %2675 = vst.msk [vmem:[%s234 + $0xf8] sm:$0xf] %vm2612, %v2418
        %2676 = vst.msk [vmem:[%s234 + $0xfc] sm:$0xf] %vm2612, %v2419
        %2677 = vst.msk [vmem:[%s234 + $0x100] sm:$0xf] %vm2612, %v2420
        %2678 = vst.msk [vmem:[%s234 + $0x104] sm:$0xf] %vm2612, %v2421
        %2679 = vst.msk [vmem:[%s234 + $0x108] sm:$0xf] %vm2612, %v2422
        %2680 = vst.msk [vmem:[%s234 + $0x10c] sm:$0xf] %vm2612, %v2423
        %2681 = vst.msk [vmem:[%s234 + $0x110] sm:$0xf] %vm2612, %v2424
        %2682 = vst.msk [vmem:[%s234 + $0x114] sm:$0xf] %vm2612, %v2425
        %2683 = vst.msk [vmem:[%s234 + $0x118] sm:$0xf] %vm2612, %v2426
        %2684 = vst.msk [vmem:[%s234 + $0x11c] sm:$0xf] %vm2612, %v2427
        %2685 = vst.msk [vmem:[%s234 + $0x120] sm:$0xf] %vm2612, %v2428
        %2686 = vst.msk [vmem:[%s234 + $0x124] sm:$0xf] %vm2612, %v2429
        %2687 = vst.msk [vmem:[%s234 + $0x128] sm:$0xf] %vm2612, %v2430
        %2688 = vst.msk [vmem:[%s234 + $0x12c] sm:$0xf] %vm2612, %v2431
        %2689 = vst.msk [vmem:[%s234 + $0x130] sm:$0xf] %vm2612, %v2432
        %2690 = vst.msk [vmem:[%s234 + $0x134] sm:$0xf] %vm2612, %v2433
        %2691 = vst.msk [vmem:[%s234 + $0x138] sm:$0xf] %vm2612, %v2434
        %2692 = vst.msk [vmem:[%s234 + $0x13c] sm:$0xf] %vm2612, %v2435
        %2693 = vst.msk [vmem:[%s234 + $0x140] sm:$0xf] %vm2612, %v2436
        %2694 = vst.msk [vmem:[%s234 + $0x144] sm:$0xf] %vm2612, %v2437
        %2695 = vst.msk [vmem:[%s234 + $0x148] sm:$0xf] %vm2612, %v2438
        %2696 = vst.msk [vmem:[%s234 + $0x14c] sm:$0xf] %vm2612, %v2439
        %2697 = vst.msk [vmem:[%s234 + $0x150] sm:$0xf] %vm2612, %v2440
        %2698 = vst.msk [vmem:[%s234 + $0x154] sm:$0xf] %vm2612, %v2441
        %2699 = vst.msk [vmem:[%s234 + $0x158] sm:$0xf] %vm2612, %v2442
        %2700 = vst.msk [vmem:[%s234 + $0x15c] sm:$0xf] %vm2612, %v2443
        %2701 = vst.msk [vmem:[%s234 + $0x160] sm:$0xf] %vm2612, %v2444
        %2702 = vst.msk [vmem:[%s234 + $0x164] sm:$0xf] %vm2612, %v2445
        %2703 = vst.msk [vmem:[%s234 + $0x168] sm:$0xf] %vm2612, %v2446
        %2704 = vst.msk [vmem:[%s234 + $0x16c] sm:$0xf] %vm2612, %v2447
        %2705 = vst.msk [vmem:[%s234 + $0x170] sm:$0xf] %vm2612, %v2448
        %2706 = vst.msk [vmem:[%s234 + $0x174] sm:$0xf] %vm2612, %v2449
        %2707 = vst.msk [vmem:[%s234 + $0x178] sm:$0xf] %vm2612, %v2450
        %2708 = vst.msk [vmem:[%s234 + $0x17c] sm:$0xf] %vm2612, %v2451
        %2709 = vst.msk [vmem:[%s234 + $0x180] sm:$0xf] %vm2612, %v2452
        %2710 = vst.msk [vmem:[%s234 + $0x184] sm:$0xf] %vm2612, %v2453
        %2711 = vst.msk [vmem:[%s234 + $0x188] sm:$0xf] %vm2612, %v2454
        %2712 = vst.msk [vmem:[%s234 + $0x18c] sm:$0xf] %vm2612, %v2455
        %2713 = vst.msk [vmem:[%s234 + $0x190] sm:$0xf] %vm2612, %v2456
        %2714 = vst.msk [vmem:[%s234 + $0x194] sm:$0xf] %vm2612, %v2457
        %2715 = vst.msk [vmem:[%s234 + $0x198] sm:$0xf] %vm2612, %v2458
        %2716 = vst.msk [vmem:[%s234 + $0x19c] sm:$0xf] %vm2612, %v2459
        %2717 = vst.msk [vmem:[%s234 + $0x1a0] sm:$0xf] %vm2612, %v2460
        %2718 = vst.msk [vmem:[%s234 + $0x1a4] sm:$0xf] %vm2612, %v2461
        %2719 = vst.msk [vmem:[%s234 + $0x1a8] sm:$0xf] %vm2612, %v2462
        %2720 = vst.msk [vmem:[%s234 + $0x1ac] sm:$0xf] %vm2612, %v2463
        %2721 = vst.msk [vmem:[%s234 + $0x1b0] sm:$0xf] %vm2612, %v2464
        %2722 = vst.msk [vmem:[%s234 + $0x1b4] sm:$0xf] %vm2612, %v2465
        %2723 = vst.msk [vmem:[%s234 + $0x1b8] sm:$0xf] %vm2612, %v2466
        %2724 = vst.msk [vmem:[%s234 + $0x1bc] sm:$0xf] %vm2612, %v2467
        %2725 = vst.msk [vmem:[%s234 + $0x1c0] sm:$0xf] %vm2612, %v2468
        %2726 = vst.msk [vmem:[%s234 + $0x1c4] sm:$0xf] %vm2612, %v2469
        %2727 = vst.msk [vmem:[%s234 + $0x1c8] sm:$0xf] %vm2612, %v2470
        %2728 = vst.msk [vmem:[%s234 + $0x1cc] sm:$0xf] %vm2612, %v2471
        %2729 = vst.msk [vmem:[%s234 + $0x1d0] sm:$0xf] %vm2612, %v2472
        %2730 = vst.msk [vmem:[%s234 + $0x1d4] sm:$0xf] %vm2612, %v2473
        %2731 = vst.msk [vmem:[%s234 + $0x1d8] sm:$0xf] %vm2612, %v2474
        %2732 = vst.msk [vmem:[%s234 + $0x1dc] sm:$0xf] %vm2612, %v2475
        %2733 = vst.msk [vmem:[%s234 + $0x1e0] sm:$0xf] %vm2612, %v2476
        %2734 = vst.msk [vmem:[%s234 + $0x1e4] sm:$0xf] %vm2612, %v2477
        %2735 = vst.msk [vmem:[%s234 + $0x1e8] sm:$0xf] %vm2612, %v2478
        %2736 = vst.msk [vmem:[%s234 + $0x1ec] sm:$0xf] %vm2612, %v2479
        %2737 = vst.msk [vmem:[%s234 + $0x1f0] sm:$0xf] %vm2612, %v2480
        %2738 = vst.msk [vmem:[%s234 + $0x1f4] sm:$0xf] %vm2612, %v2481
        %2739 = vst.msk [vmem:[%s234 + $0x1f8] sm:$0xf] %vm2612, %v2482
        %2740 = vst.msk [vmem:[%s234 + $0x1fc] sm:$0xf] %vm2612, %v2483
        %s2741 = smul.u32 128, %s20
        %p2742 = scmp.lt.s32.totalorder %s2741, 8191
        %s2743 = scalar_select %p2742, %s2741, 8191
        %p2744 = scmp.lt.s32.totalorder %s21, 0
        %s2745 = scalar_select %p2744, %s21, 0
        %s2746 = sadd.s32 %s2745, %s2743
        %s2747 = smul.addr %s2746, 4
        %s2748 = scalar_lea.vmem %s3, %s2747
        // Predicated region
        $region41: #{pallas_matmul_fused.1} parent=31 // pred_check
          %p2749 = pneg %p126
        $region42: #{pallas_matmul_fused.1} parent=31 // pred_check_branch
          %2751 = sbr.rel (%p2749) target = $region44
        $region43: #{pallas_matmul_fused.1} parent=31 // pred_region
          %s2752 = smul.u32 128, %s20
        $region44: #{pallas_matmul_fused.1} parent=31 // pred_fallthru
          _
      $region32: #{pallas_matmul_fused.1} parent=5 // pred_fallthru
        _
      %p2753 = scmp.le.s32.totalorder 2, %s11
      // Predicated region
      $region45: #{pallas_matmul_fused.1} parent=5 // pred_check
        %p2754 = pneg %p2753
      $region46: #{pallas_matmul_fused.1} parent=5 // pred_check_branch
        %2756 = sbr.rel (%p2754) target = $region48
      $region47: #{pallas_matmul_fused.1} parent=5 // pred_region
        %s2757 = ssub.s32 %s11, 2
        // Predicated region
        $region49: #{pallas_matmul_fused.1} parent=47 // pred_check
          %p2758 = pneg %p132
        $region50: #{pallas_matmul_fused.1} parent=47 // pred_check_branch
          %2760 = sbr.rel (%p2758) target = $region52
        $region51: #{pallas_matmul_fused.1} parent=47 // pred_region
          %s2761 = smul.u32 128, %s22
          %p2762 = scmp.lt.s32.totalorder %s2761, 8191
          %s2763 = scalar_select %p2762, %s2761, 8191
          %p2764 = scmp.lt.s32.totalorder %s23, 0
          %s2765 = scalar_select %p2764, %s23, 0
          %s2766 = sadd.s32 %s2765, %s2763
          %s2767 = smul.addr %s2766, 4
          %s2768 = scalar_lea.vmem %s3, %s2767
        $region52: #{pallas_matmul_fused.1} parent=47 // pred_fallthru
          _
      $region48: #{pallas_matmul_fused.1} parent=5 // pred_fallthru
        _
    $region6: #{pallas_matmul_fused.1} parent=1 // loop_footer
      %s15 = sadd.s32 1, %s11
    $region7: #{pallas_matmul_fused.1} parent=1 // loop_footer_branch
      %10 = sbr.rel target = $region3
    $region8: #{pallas_matmul_fused.1} parent=1 // loop_exit
      _
    %2769 = vsyncpa [#allocation3], 1
    %s2770 = scalar_lea.sflag [#allocation3], 1
    %2771 = vsyncpa %s2770, 1
    %2772 = vsyncpa [#allocation5], 1

</llo_original>
